<compile_context>
chip_gen: v6e
topology: v6e:2x2x1
jax: 0.10.0
libtpu: 0.0.40
codegen_flags: <defaults>
</compile_context>

<pallas_src>
import functools

import jax
import jax.numpy as jnp
from jax.experimental import pallas as pl
from jax.experimental.pallas import tpu as pltpu


# ---------------------------------------------------------------------------
# Wrapper-side weight fusion helpers (trace-time, outside the kernel).
# ---------------------------------------------------------------------------
def _interleave_block_diag(wf, wb):
    """Fuse fwd/bwd gate weights into one gate-interleaved block-diag matrix.

    wf, wb: (4*Hh, K) in PyTorch LSTM gate-row order [i, f, g, o].
    Returns W of shape (Kf + Kb, 8*Hh) such that
        [x_f | x_b] @ W = [i_f,i_b | f_f,f_b | o_f,o_b | g_f,g_b]
    with the sigmoid-gate (i, f, o) columns pre-scaled by 0.5 so the kernel
    can compute sigmoid(x) as 0.5*tanh(x/2) + 0.5 with ONE tanh over 128 lanes.
    """
    Hh = wf.shape[0] // 4
    Kf, Kb = wf.shape[1], wb.shape[1]
    zf = jnp.zeros((Kf, Hh), wf.dtype)
    zb = jnp.zeros((Kb, Hh), wb.dtype)

    def blk(w, g):  # (K, Hh) column block for PyTorch gate index g
        return w[g * Hh:(g + 1) * Hh, :].T

    cols = []
    # (pytorch gate idx, scale): i=0, f=1, o=3 (sigmoid, x0.5); g=2 (tanh, x1)
    for g, scale in ((0, 0.5), (1, 0.5), (3, 0.5), (2, 1.0)):
        cols.append(jnp.concatenate([blk(wf, g) * scale, zb], axis=0))  # fwd blk
        cols.append(jnp.concatenate([zf, blk(wb, g) * scale], axis=0))  # bwd blk
    return jnp.concatenate(cols, axis=1)  # (Kf+Kb, 8*Hh)


def _interleave_bias(bf, bb, Hh):
    """Same column reorder + 0.5 prescale for the (1, 4*Hh) folded biases."""
    cols = []
    for g, scale in ((0, 0.5), (1, 0.5), (3, 0.5), (2, 1.0)):
        cols.append(bf[:, g * Hh:(g + 1) * Hh] * scale)
        cols.append(bb[:, g * Hh:(g + 1) * Hh] * scale)
    return jnp.concatenate(cols, axis=1)  # (1, 8*Hh)


# ---------------------------------------------------------------------------
# Kernel
# ---------------------------------------------------------------------------
def bilstm_kernel(emb_ref, wih_ref, whh_ref, b_ref, attn_w_ref,
                  fc_wT_ref, fc_b_ref, bias_ref,
                  logit_ref,
                  *, N: int, S: int, train: bool):
    Hh = whh_ref.shape[0] // 2
    HD = 2 * Hh

    # ---- fused fwd+bwd input projection: ONE lane-dense (N*S, 8*Hh) matmul.
    # Row t*S+s of emb_ref already holds [emb(t,s) | emb(N-1-t,s)], so the
    # fwd/bwd gate columns come out time-aligned for the merged loop below.
    pre = (jnp.dot(emb_ref[...], wih_ref[...],
                   preferred_element_type=jnp.float32)
           + b_ref[...])                                   # (N*S, 8*Hh)

    whh = whh_ref[...]   # (2*Hh, 8*Hh); one traced value -> RHS push hoisted.

    h_cat = jnp.zeros((S, HD), jnp.float32)                # [h_fwd | h_bwd]
    c_cat = jnp.zeros((S, HD), jnp.float32)
    hs = []
    # Fully unrolled merged recurrence: fwd chain at t, bwd chain at N-1-t.
    for t in range(N):
        g = pre[t * S:(t + 1) * S, :] + jnp.dot(
            h_cat, whh, preferred_element_type=jnp.float32)  # (S, 8*Hh)
        tg = jnp.tanh(g)                      # single 128-lane EUP push
        i_cat = 0.5 * tg[:, 0:2 * Hh] + 0.5   # = sigmoid(pre-activation)
        f_cat = 0.5 * tg[:, 2 * Hh:4 * Hh] + 0.5
        o_cat = 0.5 * tg[:, 4 * Hh:6 * Hh] + 0.5
        g_cat = tg[:, 6 * Hh:8 * Hh]          # tanh gate (unscaled columns)
        c_cat = f_cat * c_cat + i_cat * g_cat
        h_cat = o_cat * jnp.tanh(c_cat)       # second EUP push (32 lanes)
        hs.append(h_cat)

    # ---- assemble (N, S, HD) output once, outside the serial chain.
    hf = jnp.stack([hs[t][:, :Hh] for t in range(N)], axis=0)          # fwd@t
    hb = jnp.stack([hs[N - 1 - t][:, Hh:] for t in range(N)], axis=0)  # bwd@t
    out = jnp.concatenate([hf, hb], axis=-1)                           # (N,S,HD)

    # ---- attention (VPU path; avoids 1-wide MXU output).
    H0 = jnp.tanh(out)
    w = attn_w_ref[...]                                     # (1, HD)
    H1 = jnp.sum(H0 * w[None, :, :], axis=-1)               # (N, S)
    H1 = H1 - jnp.max(H1, axis=1, keepdims=True)
    ex = jnp.exp(H1)
    inv = pl.reciprocal(jnp.sum(ex, axis=1, keepdims=True), approx=True)
    H2 = ex * inv                                           # softmax over S
    att = jnp.sum(out * H2[:, :, None], axis=1)             # (N, HD)

    # ---- fc, padded to a lane-dense 128-wide output (unmasked store).
    logit = jnp.dot(att, fc_wT_ref[...],
                    preferred_element_type=jnp.float32) + fc_b_ref[...]
    if train:   # static Python flag (mirrors the `if train:` branch)
        logit = logit + bias_ref[...]
    logit_ref[...] = logit


# ---------------------------------------------------------------------------
# Wrapper
# ---------------------------------------------------------------------------
def bilstm_forward(x, y, params, train=True):
    emb = jnp.take(params['embedding'], x, axis=0)        # (N, S, E); dropout=id
    bias_vals = jnp.take(params['bias_emb'], y, axis=0)   # (N, OD)
    N, S, E = emb.shape
    HD = params['attn_w'].shape[0]
    Hh = HD // 2
    OD = params['fc_w'].shape[0]
    ODp = 128                                             # lane-dense logit pad

    # [emb(t) | emb(N-1-t)] rows feed the fwd / bwd gate column blocks.
    emb_pair = jnp.concatenate([emb, emb[::-1]], axis=-1).reshape(N * S, 2 * E)

    # Gate-interleaved, 0.5-prescaled fused weights (trace time, free).
    wih_cat = _interleave_block_diag(params['wih_f'], params['wih_b'])  # (2E, 8Hh)
    whh_cat = _interleave_block_diag(params['whh_f'], params['whh_b'])  # (2Hh, 8Hh)
    b_cat = _interleave_bias(params['b_f'], params['b_b'], Hh)          # (1, 8Hh)
    attn_w = params['attn_w'].T                                         # (1, HD)

    fc_wT = jnp.zeros((HD, ODp), jnp.float32).at[:, :OD].set(params['fc_w'].T)
    fc_b = jnp.zeros((1, ODp), jnp.float32).at[:, :OD].set(params['fc_b'])
    bias_pad = jnp.zeros((N, ODp), jnp.float32).at[:, :OD].set(bias_vals)

    kernel = functools.partial(bilstm_kernel, N=N, S=S, train=train)
    vmem = lambda: pl.BlockSpec(memory_space=pltpu.MemorySpace.VMEM)

    logit_pad = pl.pallas_call(
        kernel,
        out_shape=jax.ShapeDtypeStruct((N, ODp), jnp.float32),
        in_specs=[vmem() for _ in range(8)],
        out_specs=vmem(),
    )(emb_pair, wih_cat, whh_cat, b_cat, attn_w, fc_wT, fc_b, bias_pad)

    logit = logit_pad[:, :OD]
    # sum(|bias|) depends only on an input array -> computed in the wrapper.
    sum_bias = jnp.sum(jnp.abs(bias_vals)) if train else jnp.float32(0.0)
    return logit, sum_bias


# ---------------------------------------------------------------------------
# Pure-JAX reference (matches the PyTorch forward semantics).
# ---------------------------------------------------------------------------
def bilstm_reference(x, y, params, train=True):
    emb = jnp.take(params['embedding'], x, axis=0)
    N, S, E = emb.shape
    HD = params['attn_w'].shape[0]
    Hh = HD // 2

    def run_dir(wih, whh, b, reverse):
        pre = jnp.einsum('nse,ge->nsg', emb, wih) + b
        seq = pre[::-1] if reverse else pre

        def step(carry, p):
            h, c = carry
            g = p + h @ whh.T
            i = jax.nn.sigmoid(g[:, :Hh])
            f = jax.nn.sigmoid(g[:, Hh:2 * Hh])
            gg = jnp.tanh(g[:, 2 * Hh:3 * Hh])
            o = jax.nn.sigmoid(g[:, 3 * Hh:])
            c = f * c + i * gg
            h = o * jnp.tanh(c)
            return (h, c), h

        h0 = jnp.zeros((S, Hh), jnp.float32)
        _, hs = jax.lax.scan(step, (h0, h0), seq)
        return hs[::-1] if reverse else hs

    hf = run_dir(params['wih_f'], params['whh_f'], params['b_f'], False)
    hb = run_dir(params['wih_b'], params['whh_b'], params['b_b'], True)
    out = jnp.concatenate([hf, hb], axis=-1)
    H0 = jnp.tanh(out)
    H1 = jnp.einsum('nsh,h->ns', H0, params['attn_w'][:, 0])
    H2 = jax.nn.softmax(H1, axis=1)
    att = jnp.sum(out * H2[:, :, None], axis=1)
    logit = att @ params['fc_w'].T + params['fc_b']
    sum_bias = jnp.float32(0.0)
    if train:
        bias = jnp.take(params['bias_emb'], y, axis=0)
        logit = logit + bias
        sum_bias = jnp.sum(jnp.abs(bias))
    return logit, sum_bias


def make_params(key, vocab, E, hidden_dim, output_dim, train_num):
    Hh = hidden_dim // 2
    ks = jax.random.split(key, 12)
    scale = 1.0 / jnp.sqrt(jnp.float32(Hh))

    def u(k, shape):
        return jax.random.uniform(k, shape, jnp.float32, -1.0, 1.0) * scale

    return dict(
        embedding=jax.random.normal(ks[0], (vocab, E), jnp.float32) * 0.1,
        bias_emb=jax.random.normal(ks[1], (train_num, 2), jnp.float32) * 0.1,
        wih_f=u(ks[2], (4 * Hh, E)),
        whh_f=u(ks[3], (4 * Hh, Hh)),
        b_f=u(ks[4], (1, 4 * Hh)) + u(ks[5], (1, 4 * Hh)),   # b_ih + b_hh folded
        wih_b=u(ks[6], (4 * Hh, E)),
        whh_b=u(ks[7], (4 * Hh, Hh)),
        b_b=u(ks[8], (1, 4 * Hh)) + u(ks[9], (1, 4 * Hh)),
        attn_w=jax.random.normal(ks[10], (hidden_dim, 1), jnp.float32) * 0.1,
        fc_w=jax.random.normal(ks[11], (output_dim, hidden_dim), jnp.float32) * 0.1,
        fc_b=jnp.zeros((1, output_dim), jnp.float32),
    )


if __name__ == "__main__":
    key = jax.random.PRNGKey(0)
    N, S = 8, 8                 # x: (N, S) token ids (seq-first like nn.LSTM)
    vocab, E = 32, 16           # embed_matrix shape
    hidden_dim, output_dim, train_num = 32, 2, 16

    kp, kx, ky = jax.random.split(key, 3)
    params = make_params(kp, vocab, E, hidden_dim, output_dim, train_num)
    x = jax.random.randint(kx, (N, S), 0, vocab, dtype=jnp.int32)
    y = jax.random.randint(ky, (N,), 0, train_num, dtype=jnp.int32)

    logit, sum_bias = bilstm_forward(x, y, params, train=True)
    jax.block_until_ready((logit, sum_bias))

    ref_logit, ref_sum = bilstm_reference(x, y, params, train=True)
    assert logit.shape == (N, output_dim)
    # Tolerance 1e-3: the only approximate ops are the tanh-based sigmoid
    # (mathematically exact) and the EUP approx reciprocal in the softmax.
    assert jnp.allclose(logit, ref_logit, atol=1e-3, rtol=1e-3)
    assert jnp.allclose(sum_bias, ref_sum, atol=1e-4, rtol=1e-4)
    print("KERNEL_OK")
</pallas_src>

<mosaic_0001>
module attributes {stable_mosaic.version = 11 : i64} {
  func.func @bilstm_kernel(%arg0: memref<64x32xf32, #tpu.memory_space<vmem>>, %arg1: memref<32x128xf32, #tpu.memory_space<vmem>>, %arg2: memref<32x128xf32, #tpu.memory_space<vmem>>, %arg3: memref<1x128xf32, #tpu.memory_space<vmem>>, %arg4: memref<1x32xf32, #tpu.memory_space<vmem>>, %arg5: memref<32x128xf32, #tpu.memory_space<vmem>>, %arg6: memref<1x128xf32, #tpu.memory_space<vmem>>, %arg7: memref<8x128xf32, #tpu.memory_space<vmem>>, %arg8: memref<8x128xf32, #tpu.memory_space<vmem>>) attributes {dimension_semantics = [], scalar_prefetch = 0 : i64, scratch_operands = 0 : i64, tpu.core_type = #tpu.core_type<tc>} {
    %c0 = arith.constant 0 : index
    %c0_0 = arith.constant 0 : index
    %0 = vector.load %arg0[%c0, %c0_0] : memref<64x32xf32, #tpu.memory_space<vmem>>, vector<64x32xf32>
    %c0_1 = arith.constant 0 : index
    %c0_2 = arith.constant 0 : index
    %1 = vector.load %arg1[%c0_1, %c0_2] : memref<32x128xf32, #tpu.memory_space<vmem>>, vector<32x128xf32>
    %cst = arith.constant dense<0.000000e+00> : vector<64x128xf32>
    %2 = tpu.matmul %0, %1, %cst {dimension_numbers = #tpu.dot_dimension_numbers<[1], [0], [0], [1], [0, 0, 1, 1], [], []>} : vector<64x32xf32>, vector<32x128xf32>, vector<64x128xf32> -> vector<64x128xf32>
    %c0_3 = arith.constant 0 : index
    %c0_4 = arith.constant 0 : index
    %3 = vector.load %arg3[%c0_3, %c0_4] : memref<1x128xf32, #tpu.memory_space<vmem>>, vector<1x128xf32>
    %4 = vector.broadcast %3 : vector<1x128xf32> to vector<64x128xf32>
    %5 = arith.addf %2, %4 : vector<64x128xf32>
    %c0_5 = arith.constant 0 : index
    %c0_6 = arith.constant 0 : index
    %6 = vector.load %arg2[%c0_5, %c0_6] : memref<32x128xf32, #tpu.memory_space<vmem>>, vector<32x128xf32>
    %cst_7 = arith.constant 0.000000e+00 : f32
    %7 = vector.broadcast %cst_7 : f32 to vector<8x32xf32>
    %cst_8 = arith.constant 0.000000e+00 : f32
    %8 = vector.broadcast %cst_8 : f32 to vector<8x32xf32>
    %9 = vector.extract_strided_slice %5 {offsets = [0, 0], sizes = [8, 128], strides = [1, 1]} : vector<64x128xf32> to vector<8x128xf32>
    %cst_9 = arith.constant dense<0.000000e+00> : vector<8x128xf32>
    %10 = tpu.matmul %7, %6, %cst_9 {dimension_numbers = #tpu.dot_dimension_numbers<[1], [0], [0], [1], [0, 0, 1, 1], [], []>} : vector<8x32xf32>, vector<32x128xf32>, vector<8x128xf32> -> vector<8x128xf32>
    %11 = arith.addf %9, %10 : vector<8x128xf32>
    %12 = math.tanh %11 : vector<8x128xf32>
    %13 = vector.extract_strided_slice %12 {offsets = [0, 0], sizes = [8, 32], strides = [1, 1]} : vector<8x128xf32> to vector<8x32xf32>
    %cst_10 = arith.constant 5.000000e-01 : f32
    %14 = vector.broadcast %cst_10 : f32 to vector<8x32xf32>
    %15 = arith.mulf %14, %13 : vector<8x32xf32>
    %cst_11 = arith.constant 5.000000e-01 : f32
    %16 = vector.broadcast %cst_11 : f32 to vector<8x32xf32>
    %17 = arith.addf %15, %16 : vector<8x32xf32>
    %18 = vector.extract_strided_slice %12 {offsets = [0, 32], sizes = [8, 32], strides = [1, 1]} : vector<8x128xf32> to vector<8x32xf32>
    %cst_12 = arith.constant 5.000000e-01 : f32
    %19 = vector.broadcast %cst_12 : f32 to vector<8x32xf32>
    %20 = arith.mulf %19, %18 : vector<8x32xf32>
    %cst_13 = arith.constant 5.000000e-01 : f32
    %21 = vector.broadcast %cst_13 : f32 to vector<8x32xf32>
    %22 = arith.addf %20, %21 : vector<8x32xf32>
    %23 = vector.extract_strided_slice %12 {offsets = [0, 64], sizes = [8, 32], strides = [1, 1]} : vector<8x128xf32> to vector<8x32xf32>
    %cst_14 = arith.constant 5.000000e-01 : f32
    %24 = vector.broadcast %cst_14 : f32 to vector<8x32xf32>
    %25 = arith.mulf %24, %23 : vector<8x32xf32>
    %cst_15 = arith.constant 5.000000e-01 : f32
    %26 = vector.broadcast %cst_15 : f32 to vector<8x32xf32>
    %27 = arith.addf %25, %26 : vector<8x32xf32>
    %28 = vector.extract_strided_slice %12 {offsets = [0, 96], sizes = [8, 32], strides = [1, 1]} : vector<8x128xf32> to vector<8x32xf32>
    %29 = arith.mulf %22, %8 : vector<8x32xf32>
    %30 = arith.mulf %17, %28 : vector<8x32xf32>
    %31 = arith.addf %29, %30 : vector<8x32xf32>
    %32 = math.tanh %31 : vector<8x32xf32>
    %33 = arith.mulf %27, %32 : vector<8x32xf32>
    %34 = vector.extract_strided_slice %5 {offsets = [8, 0], sizes = [8, 128], strides = [1, 1]} : vector<64x128xf32> to vector<8x128xf32>
    %cst_16 = arith.constant dense<0.000000e+00> : vector<8x128xf32>
    %35 = tpu.matmul %33, %6, %cst_16 {dimension_numbers = #tpu.dot_dimension_numbers<[1], [0], [0], [1], [0, 0, 1, 1], [], []>} : vector<8x32xf32>, vector<32x128xf32>, vector<8x128xf32> -> vector<8x128xf32>
    %36 = arith.addf %34, %35 : vector<8x128xf32>
    %37 = math.tanh %36 : vector<8x128xf32>
    %38 = vector.extract_strided_slice %37 {offsets = [0, 0], sizes = [8, 32], strides = [1, 1]} : vector<8x128xf32> to vector<8x32xf32>
    %cst_17 = arith.constant 5.000000e-01 : f32
    %39 = vector.broadcast %cst_17 : f32 to vector<8x32xf32>
    %40 = arith.mulf %39, %38 : vector<8x32xf32>
    %cst_18 = arith.constant 5.000000e-01 : f32
    %41 = vector.broadcast %cst_18 : f32 to vector<8x32xf32>
    %42 = arith.addf %40, %41 : vector<8x32xf32>
    %43 = vector.extract_strided_slice %37 {offsets = [0, 32], sizes = [8, 32], strides = [1, 1]} : vector<8x128xf32> to vector<8x32xf32>
    %cst_19 = arith.constant 5.000000e-01 : f32
    %44 = vector.broadcast %cst_19 : f32 to vector<8x32xf32>
    %45 = arith.mulf %44, %43 : vector<8x32xf32>
    %cst_20 = arith.constant 5.000000e-01 : f32
    %46 = vector.broadcast %cst_20 : f32 to vector<8x32xf32>
    %47 = arith.addf %45, %46 : vector<8x32xf32>
    %48 = vector.extract_strided_slice %37 {offsets = [0, 64], sizes = [8, 32], strides = [1, 1]} : vector<8x128xf32> to vector<8x32xf32>
    %cst_21 = arith.constant 5.000000e-01 : f32
    %49 = vector.broadcast %cst_21 : f32 to vector<8x32xf32>
    %50 = arith.mulf %49, %48 : vector<8x32xf32>
    %cst_22 = arith.constant 5.000000e-01 : f32
    %51 = vector.broadcast %cst_22 : f32 to vector<8x32xf32>
    %52 = arith.addf %50, %51 : vector<8x32xf32>
    %53 = vector.extract_strided_slice %37 {offsets = [0, 96], sizes = [8, 32], strides = [1, 1]} : vector<8x128xf32> to vector<8x32xf32>
    %54 = arith.mulf %47, %31 : vector<8x32xf32>
    %55 = arith.mulf %42, %53 : vector<8x32xf32>
    %56 = arith.addf %54, %55 : vector<8x32xf32>
    %57 = math.tanh %56 : vector<8x32xf32>
    %58 = arith.mulf %52, %57 : vector<8x32xf32>
    %59 = vector.extract_strided_slice %5 {offsets = [16, 0], sizes = [8, 128], strides = [1, 1]} : vector<64x128xf32> to vector<8x128xf32>
    %cst_23 = arith.constant dense<0.000000e+00> : vector<8x128xf32>
    %60 = tpu.matmul %58, %6, %cst_23 {dimension_numbers = #tpu.dot_dimension_numbers<[1], [0], [0], [1], [0, 0, 1, 1], [], []>} : vector<8x32xf32>, vector<32x128xf32>, vector<8x128xf32> -> vector<8x128xf32>
    %61 = arith.addf %59, %60 : vector<8x128xf32>
    %62 = math.tanh %61 : vector<8x128xf32>
    %63 = vector.extract_strided_slice %62 {offsets = [0, 0], sizes = [8, 32], strides = [1, 1]} : vector<8x128xf32> to vector<8x32xf32>
    %cst_24 = arith.constant 5.000000e-01 : f32
    %64 = vector.broadcast %cst_24 : f32 to vector<8x32xf32>
    %65 = arith.mulf %64, %63 : vector<8x32xf32>
    %cst_25 = arith.constant 5.000000e-01 : f32
    %66 = vector.broadcast %cst_25 : f32 to vector<8x32xf32>
    %67 = arith.addf %65, %66 : vector<8x32xf32>
    %68 = vector.extract_strided_slice %62 {offsets = [0, 32], sizes = [8, 32], strides = [1, 1]} : vector<8x128xf32> to vector<8x32xf32>
    %cst_26 = arith.constant 5.000000e-01 : f32
    %69 = vector.broadcast %cst_26 : f32 to vector<8x32xf32>
    %70 = arith.mulf %69, %68 : vector<8x32xf32>
    %cst_27 = arith.constant 5.000000e-01 : f32
    %71 = vector.broadcast %cst_27 : f32 to vector<8x32xf32>
    %72 = arith.addf %70, %71 : vector<8x32xf32>
    %73 = vector.extract_strided_slice %62 {offsets = [0, 64], sizes = [8, 32], strides = [1, 1]} : vector<8x128xf32> to vector<8x32xf32>
    %cst_28 = arith.constant 5.000000e-01 : f32
    %74 = vector.broadcast %cst_28 : f32 to vector<8x32xf32>
    %75 = arith.mulf %74, %73 : vector<8x32xf32>
    %cst_29 = arith.constant 5.000000e-01 : f32
    %76 = vector.broadcast %cst_29 : f32 to vector<8x32xf32>
    %77 = arith.addf %75, %76 : vector<8x32xf32>
    %78 = vector.extract_strided_slice %62 {offsets = [0, 96], sizes = [8, 32], strides = [1, 1]} : vector<8x128xf32> to vector<8x32xf32>
    %79 = arith.mulf %72, %56 : vector<8x32xf32>
    %80 = arith.mulf %67, %78 : vector<8x32xf32>
    %81 = arith.addf %79, %80 : vector<8x32xf32>
    %82 = math.tanh %81 : vector<8x32xf32>
    %83 = arith.mulf %77, %82 : vector<8x32xf32>
    %84 = vector.extract_strided_slice %5 {offsets = [24, 0], sizes = [8, 128], strides = [1, 1]} : vector<64x128xf32> to vector<8x128xf32>
    %cst_30 = arith.constant dense<0.000000e+00> : vector<8x128xf32>
    %85 = tpu.matmul %83, %6, %cst_30 {dimension_numbers = #tpu.dot_dimension_numbers<[1], [0], [0], [1], [0, 0, 1, 1], [], []>} : vector<8x32xf32>, vector<32x128xf32>, vector<8x128xf32> -> vector<8x128xf32>
    %86 = arith.addf %84, %85 : vector<8x128xf32>
    %87 = math.tanh %86 : vector<8x128xf32>
    %88 = vector.extract_strided_slice %87 {offsets = [0, 0], sizes = [8, 32], strides = [1, 1]} : vector<8x128xf32> to vector<8x32xf32>
    %cst_31 = arith.constant 5.000000e-01 : f32
    %89 = vector.broadcast %cst_31 : f32 to vector<8x32xf32>
    %90 = arith.mulf %89, %88 : vector<8x32xf32>
    %cst_32 = arith.constant 5.000000e-01 : f32
    %91 = vector.broadcast %cst_32 : f32 to vector<8x32xf32>
    %92 = arith.addf %90, %91 : vector<8x32xf32>
    %93 = vector.extract_strided_slice %87 {offsets = [0, 32], sizes = [8, 32], strides = [1, 1]} : vector<8x128xf32> to vector<8x32xf32>
    %cst_33 = arith.constant 5.000000e-01 : f32
    %94 = vector.broadcast %cst_33 : f32 to vector<8x32xf32>
    %95 = arith.mulf %94, %93 : vector<8x32xf32>
    %cst_34 = arith.constant 5.000000e-01 : f32
    %96 = vector.broadcast %cst_34 : f32 to vector<8x32xf32>
    %97 = arith.addf %95, %96 : vector<8x32xf32>
    %98 = vector.extract_strided_slice %87 {offsets = [0, 64], sizes = [8, 32], strides = [1, 1]} : vector<8x128xf32> to vector<8x32xf32>
    %cst_35 = arith.constant 5.000000e-01 : f32
    %99 = vector.broadcast %cst_35 : f32 to vector<8x32xf32>
    %100 = arith.mulf %99, %98 : vector<8x32xf32>
    %cst_36 = arith.constant 5.000000e-01 : f32
    %101 = vector.broadcast %cst_36 : f32 to vector<8x32xf32>
    %102 = arith.addf %100, %101 : vector<8x32xf32>
    %103 = vector.extract_strided_slice %87 {offsets = [0, 96], sizes = [8, 32], strides = [1, 1]} : vector<8x128xf32> to vector<8x32xf32>
    %104 = arith.mulf %97, %81 : vector<8x32xf32>
    %105 = arith.mulf %92, %103 : vector<8x32xf32>
    %106 = arith.addf %104, %105 : vector<8x32xf32>
    %107 = math.tanh %106 : vector<8x32xf32>
    %108 = arith.mulf %102, %107 : vector<8x32xf32>
    %109 = vector.extract_strided_slice %5 {offsets = [32, 0], sizes = [8, 128], strides = [1, 1]} : vector<64x128xf32> to vector<8x128xf32>
    %cst_37 = arith.constant dense<0.000000e+00> : vector<8x128xf32>
    %110 = tpu.matmul %108, %6, %cst_37 {dimension_numbers = #tpu.dot_dimension_numbers<[1], [0], [0], [1], [0, 0, 1, 1], [], []>} : vector<8x32xf32>, vector<32x128xf32>, vector<8x128xf32> -> vector<8x128xf32>
    %111 = arith.addf %109, %110 : vector<8x128xf32>
    %112 = math.tanh %111 : vector<8x128xf32>
    %113 = vector.extract_strided_slice %112 {offsets = [0, 0], sizes = [8, 32], strides = [1, 1]} : vector<8x128xf32> to vector<8x32xf32>
    %cst_38 = arith.constant 5.000000e-01 : f32
    %114 = vector.broadcast %cst_38 : f32 to vector<8x32xf32>
    %115 = arith.mulf %114, %113 : vector<8x32xf32>
    %cst_39 = arith.constant 5.000000e-01 : f32
    %116 = vector.broadcast %cst_39 : f32 to vector<8x32xf32>
    %117 = arith.addf %115, %116 : vector<8x32xf32>
    %118 = vector.extract_strided_slice %112 {offsets = [0, 32], sizes = [8, 32], strides = [1, 1]} : vector<8x128xf32> to vector<8x32xf32>
    %cst_40 = arith.constant 5.000000e-01 : f32
    %119 = vector.broadcast %cst_40 : f32 to vector<8x32xf32>
    %120 = arith.mulf %119, %118 : vector<8x32xf32>
    %cst_41 = arith.constant 5.000000e-01 : f32
    %121 = vector.broadcast %cst_41 : f32 to vector<8x32xf32>
    %122 = arith.addf %120, %121 : vector<8x32xf32>
    %123 = vector.extract_strided_slice %112 {offsets = [0, 64], sizes = [8, 32], strides = [1, 1]} : vector<8x128xf32> to vector<8x32xf32>
    %cst_42 = arith.constant 5.000000e-01 : f32
    %124 = vector.broadcast %cst_42 : f32 to vector<8x32xf32>
    %125 = arith.mulf %124, %123 : vector<8x32xf32>
    %cst_43 = arith.constant 5.000000e-01 : f32
    %126 = vector.broadcast %cst_43 : f32 to vector<8x32xf32>
    %127 = arith.addf %125, %126 : vector<8x32xf32>
    %128 = vector.extract_strided_slice %112 {offsets = [0, 96], sizes = [8, 32], strides = [1, 1]} : vector<8x128xf32> to vector<8x32xf32>
    %129 = arith.mulf %122, %106 : vector<8x32xf32>
    %130 = arith.mulf %117, %128 : vector<8x32xf32>
    %131 = arith.addf %129, %130 : vector<8x32xf32>
    %132 = math.tanh %131 : vector<8x32xf32>
    %133 = arith.mulf %127, %132 : vector<8x32xf32>
    %134 = vector.extract_strided_slice %5 {offsets = [40, 0], sizes = [8, 128], strides = [1, 1]} : vector<64x128xf32> to vector<8x128xf32>
    %cst_44 = arith.constant dense<0.000000e+00> : vector<8x128xf32>
    %135 = tpu.matmul %133, %6, %cst_44 {dimension_numbers = #tpu.dot_dimension_numbers<[1], [0], [0], [1], [0, 0, 1, 1], [], []>} : vector<8x32xf32>, vector<32x128xf32>, vector<8x128xf32> -> vector<8x128xf32>
    %136 = arith.addf %134, %135 : vector<8x128xf32>
    %137 = math.tanh %136 : vector<8x128xf32>
    %138 = vector.extract_strided_slice %137 {offsets = [0, 0], sizes = [8, 32], strides = [1, 1]} : vector<8x128xf32> to vector<8x32xf32>
    %cst_45 = arith.constant 5.000000e-01 : f32
    %139 = vector.broadcast %cst_45 : f32 to vector<8x32xf32>
    %140 = arith.mulf %139, %138 : vector<8x32xf32>
    %cst_46 = arith.constant 5.000000e-01 : f32
    %141 = vector.broadcast %cst_46 : f32 to vector<8x32xf32>
    %142 = arith.addf %140, %141 : vector<8x32xf32>
    %143 = vector.extract_strided_slice %137 {offsets = [0, 32], sizes = [8, 32], strides = [1, 1]} : vector<8x128xf32> to vector<8x32xf32>
    %cst_47 = arith.constant 5.000000e-01 : f32
    %144 = vector.broadcast %cst_47 : f32 to vector<8x32xf32>
    %145 = arith.mulf %144, %143 : vector<8x32xf32>
    %cst_48 = arith.constant 5.000000e-01 : f32
    %146 = vector.broadcast %cst_48 : f32 to vector<8x32xf32>
    %147 = arith.addf %145, %146 : vector<8x32xf32>
    %148 = vector.extract_strided_slice %137 {offsets = [0, 64], sizes = [8, 32], strides = [1, 1]} : vector<8x128xf32> to vector<8x32xf32>
    %cst_49 = arith.constant 5.000000e-01 : f32
    %149 = vector.broadcast %cst_49 : f32 to vector<8x32xf32>
    %150 = arith.mulf %149, %148 : vector<8x32xf32>
    %cst_50 = arith.constant 5.000000e-01 : f32
    %151 = vector.broadcast %cst_50 : f32 to vector<8x32xf32>
    %152 = arith.addf %150, %151 : vector<8x32xf32>
    %153 = vector.extract_strided_slice %137 {offsets = [0, 96], sizes = [8, 32], strides = [1, 1]} : vector<8x128xf32> to vector<8x32xf32>
    %154 = arith.mulf %147, %131 : vector<8x32xf32>
    %155 = arith.mulf %142, %153 : vector<8x32xf32>
    %156 = arith.addf %154, %155 : vector<8x32xf32>
    %157 = math.tanh %156 : vector<8x32xf32>
    %158 = arith.mulf %152, %157 : vector<8x32xf32>
    %159 = vector.extract_strided_slice %5 {offsets = [48, 0], sizes = [8, 128], strides = [1, 1]} : vector<64x128xf32> to vector<8x128xf32>
    %cst_51 = arith.constant dense<0.000000e+00> : vector<8x128xf32>
    %160 = tpu.matmul %158, %6, %cst_51 {dimension_numbers = #tpu.dot_dimension_numbers<[1], [0], [0], [1], [0, 0, 1, 1], [], []>} : vector<8x32xf32>, vector<32x128xf32>, vector<8x128xf32> -> vector<8x128xf32>
    %161 = arith.addf %159, %160 : vector<8x128xf32>
    %162 = math.tanh %161 : vector<8x128xf32>
    %163 = vector.extract_strided_slice %162 {offsets = [0, 0], sizes = [8, 32], strides = [1, 1]} : vector<8x128xf32> to vector<8x32xf32>
    %cst_52 = arith.constant 5.000000e-01 : f32
    %164 = vector.broadcast %cst_52 : f32 to vector<8x32xf32>
    %165 = arith.mulf %164, %163 : vector<8x32xf32>
    %cst_53 = arith.constant 5.000000e-01 : f32
    %166 = vector.broadcast %cst_53 : f32 to vector<8x32xf32>
    %167 = arith.addf %165, %166 : vector<8x32xf32>
    %168 = vector.extract_strided_slice %162 {offsets = [0, 32], sizes = [8, 32], strides = [1, 1]} : vector<8x128xf32> to vector<8x32xf32>
    %cst_54 = arith.constant 5.000000e-01 : f32
    %169 = vector.broadcast %cst_54 : f32 to vector<8x32xf32>
    %170 = arith.mulf %169, %168 : vector<8x32xf32>
    %cst_55 = arith.constant 5.000000e-01 : f32
    %171 = vector.broadcast %cst_55 : f32 to vector<8x32xf32>
    %172 = arith.addf %170, %171 : vector<8x32xf32>
    %173 = vector.extract_strided_slice %162 {offsets = [0, 64], sizes = [8, 32], strides = [1, 1]} : vector<8x128xf32> to vector<8x32xf32>
    %cst_56 = arith.constant 5.000000e-01 : f32
    %174 = vector.broadcast %cst_56 : f32 to vector<8x32xf32>
    %175 = arith.mulf %174, %173 : vector<8x32xf32>
    %cst_57 = arith.constant 5.000000e-01 : f32
    %176 = vector.broadcast %cst_57 : f32 to vector<8x32xf32>
    %177 = arith.addf %175, %176 : vector<8x32xf32>
    %178 = vector.extract_strided_slice %162 {offsets = [0, 96], sizes = [8, 32], strides = [1, 1]} : vector<8x128xf32> to vector<8x32xf32>
    %179 = arith.mulf %172, %156 : vector<8x32xf32>
    %180 = arith.mulf %167, %178 : vector<8x32xf32>
    %181 = arith.addf %179, %180 : vector<8x32xf32>
    %182 = math.tanh %181 : vector<8x32xf32>
    %183 = arith.mulf %177, %182 : vector<8x32xf32>
    %184 = vector.extract_strided_slice %5 {offsets = [56, 0], sizes = [8, 128], strides = [1, 1]} : vector<64x128xf32> to vector<8x128xf32>
    %cst_58 = arith.constant dense<0.000000e+00> : vector<8x128xf32>
    %185 = tpu.matmul %183, %6, %cst_58 {dimension_numbers = #tpu.dot_dimension_numbers<[1], [0], [0], [1], [0, 0, 1, 1], [], []>} : vector<8x32xf32>, vector<32x128xf32>, vector<8x128xf32> -> vector<8x128xf32>
    %186 = arith.addf %184, %185 : vector<8x128xf32>
    %187 = math.tanh %186 : vector<8x128xf32>
    %188 = vector.extract_strided_slice %187 {offsets = [0, 0], sizes = [8, 32], strides = [1, 1]} : vector<8x128xf32> to vector<8x32xf32>
    %cst_59 = arith.constant 5.000000e-01 : f32
    %189 = vector.broadcast %cst_59 : f32 to vector<8x32xf32>
    %190 = arith.mulf %189, %188 : vector<8x32xf32>
    %cst_60 = arith.constant 5.000000e-01 : f32
    %191 = vector.broadcast %cst_60 : f32 to vector<8x32xf32>
    %192 = arith.addf %190, %191 : vector<8x32xf32>
    %193 = vector.extract_strided_slice %187 {offsets = [0, 32], sizes = [8, 32], strides = [1, 1]} : vector<8x128xf32> to vector<8x32xf32>
    %cst_61 = arith.constant 5.000000e-01 : f32
    %194 = vector.broadcast %cst_61 : f32 to vector<8x32xf32>
    %195 = arith.mulf %194, %193 : vector<8x32xf32>
    %cst_62 = arith.constant 5.000000e-01 : f32
    %196 = vector.broadcast %cst_62 : f32 to vector<8x32xf32>
    %197 = arith.addf %195, %196 : vector<8x32xf32>
    %198 = vector.extract_strided_slice %187 {offsets = [0, 64], sizes = [8, 32], strides = [1, 1]} : vector<8x128xf32> to vector<8x32xf32>
    %cst_63 = arith.constant 5.000000e-01 : f32
    %199 = vector.broadcast %cst_63 : f32 to vector<8x32xf32>
    %200 = arith.mulf %199, %198 : vector<8x32xf32>
    %cst_64 = arith.constant 5.000000e-01 : f32
    %201 = vector.broadcast %cst_64 : f32 to vector<8x32xf32>
    %202 = arith.addf %200, %201 : vector<8x32xf32>
    %203 = vector.extract_strided_slice %187 {offsets = [0, 96], sizes = [8, 32], strides = [1, 1]} : vector<8x128xf32> to vector<8x32xf32>
    %204 = arith.mulf %197, %181 : vector<8x32xf32>
    %205 = arith.mulf %192, %203 : vector<8x32xf32>
    %206 = arith.addf %204, %205 : vector<8x32xf32>
    %207 = math.tanh %206 : vector<8x32xf32>
    %208 = arith.mulf %202, %207 : vector<8x32xf32>
    %209 = vector.extract_strided_slice %33 {offsets = [0, 0], sizes = [8, 16], strides = [1, 1]} : vector<8x32xf32> to vector<8x16xf32>
    %210 = vector.extract_strided_slice %58 {offsets = [0, 0], sizes = [8, 16], strides = [1, 1]} : vector<8x32xf32> to vector<8x16xf32>
    %211 = vector.extract_strided_slice %83 {offsets = [0, 0], sizes = [8, 16], strides = [1, 1]} : vector<8x32xf32> to vector<8x16xf32>
    %212 = vector.extract_strided_slice %108 {offsets = [0, 0], sizes = [8, 16], strides = [1, 1]} : vector<8x32xf32> to vector<8x16xf32>
    %213 = vector.extract_strided_slice %133 {offsets = [0, 0], sizes = [8, 16], strides = [1, 1]} : vector<8x32xf32> to vector<8x16xf32>
    %214 = vector.extract_strided_slice %158 {offsets = [0, 0], sizes = [8, 16], strides = [1, 1]} : vector<8x32xf32> to vector<8x16xf32>
    %215 = vector.extract_strided_slice %183 {offsets = [0, 0], sizes = [8, 16], strides = [1, 1]} : vector<8x32xf32> to vector<8x16xf32>
    %216 = vector.extract_strided_slice %208 {offsets = [0, 0], sizes = [8, 16], strides = [1, 1]} : vector<8x32xf32> to vector<8x16xf32>
    %217 = vector.shape_cast %209 : vector<8x16xf32> to vector<1x8x16xf32>
    %218 = vector.shape_cast %210 : vector<8x16xf32> to vector<1x8x16xf32>
    %219 = vector.shape_cast %211 : vector<8x16xf32> to vector<1x8x16xf32>
    %220 = vector.shape_cast %212 : vector<8x16xf32> to vector<1x8x16xf32>
    %221 = vector.shape_cast %213 : vector<8x16xf32> to vector<1x8x16xf32>
    %222 = vector.shape_cast %214 : vector<8x16xf32> to vector<1x8x16xf32>
    %223 = vector.shape_cast %215 : vector<8x16xf32> to vector<1x8x16xf32>
    %224 = vector.shape_cast %216 : vector<8x16xf32> to vector<1x8x16xf32>
    %225 = tpu.concatenate %217, %218, %219, %220, %221, %222, %223, %224 in 0 : vector<1x8x16xf32>, vector<1x8x16xf32>, vector<1x8x16xf32>, vector<1x8x16xf32>, vector<1x8x16xf32>, vector<1x8x16xf32>, vector<1x8x16xf32>, vector<1x8x16xf32> -> vector<8x8x16xf32>
    %226 = vector.extract_strided_slice %208 {offsets = [0, 16], sizes = [8, 16], strides = [1, 1]} : vector<8x32xf32> to vector<8x16xf32>
    %227 = vector.extract_strided_slice %183 {offsets = [0, 16], sizes = [8, 16], strides = [1, 1]} : vector<8x32xf32> to vector<8x16xf32>
    %228 = vector.extract_strided_slice %158 {offsets = [0, 16], sizes = [8, 16], strides = [1, 1]} : vector<8x32xf32> to vector<8x16xf32>
    %229 = vector.extract_strided_slice %133 {offsets = [0, 16], sizes = [8, 16], strides = [1, 1]} : vector<8x32xf32> to vector<8x16xf32>
    %230 = vector.extract_strided_slice %108 {offsets = [0, 16], sizes = [8, 16], strides = [1, 1]} : vector<8x32xf32> to vector<8x16xf32>
    %231 = vector.extract_strided_slice %83 {offsets = [0, 16], sizes = [8, 16], strides = [1, 1]} : vector<8x32xf32> to vector<8x16xf32>
    %232 = vector.extract_strided_slice %58 {offsets = [0, 16], sizes = [8, 16], strides = [1, 1]} : vector<8x32xf32> to vector<8x16xf32>
    %233 = vector.extract_strided_slice %33 {offsets = [0, 16], sizes = [8, 16], strides = [1, 1]} : vector<8x32xf32> to vector<8x16xf32>
    %234 = vector.shape_cast %226 : vector<8x16xf32> to vector<1x8x16xf32>
    %235 = vector.shape_cast %227 : vector<8x16xf32> to vector<1x8x16xf32>
    %236 = vector.shape_cast %228 : vector<8x16xf32> to vector<1x8x16xf32>
    %237 = vector.shape_cast %229 : vector<8x16xf32> to vector<1x8x16xf32>
    %238 = vector.shape_cast %230 : vector<8x16xf32> to vector<1x8x16xf32>
    %239 = vector.shape_cast %231 : vector<8x16xf32> to vector<1x8x16xf32>
    %240 = vector.shape_cast %232 : vector<8x16xf32> to vector<1x8x16xf32>
    %241 = vector.shape_cast %233 : vector<8x16xf32> to vector<1x8x16xf32>
    %242 = tpu.concatenate %234, %235, %236, %237, %238, %239, %240, %241 in 0 : vector<1x8x16xf32>, vector<1x8x16xf32>, vector<1x8x16xf32>, vector<1x8x16xf32>, vector<1x8x16xf32>, vector<1x8x16xf32>, vector<1x8x16xf32>, vector<1x8x16xf32> -> vector<8x8x16xf32>
    %243 = tpu.concatenate %225, %242 in 2 : vector<8x8x16xf32>, vector<8x8x16xf32> -> vector<8x8x32xf32>
    %244 = math.tanh %243 : vector<8x8x32xf32>
    %c0_65 = arith.constant 0 : index
    %c0_66 = arith.constant 0 : index
    %245 = vector.load %arg4[%c0_65, %c0_66] : memref<1x32xf32, #tpu.memory_space<vmem>>, vector<1x32xf32>
    %246 = vector.shape_cast %245 : vector<1x32xf32> to vector<1x1x32xf32>
    %247 = vector.broadcast %246 : vector<1x1x32xf32> to vector<8x8x32xf32>
    %248 = arith.mulf %244, %247 : vector<8x8x32xf32>
    %cst_67 = arith.constant dense<0.000000e+00> : vector<8x8xf32>
    %249 = vector.multi_reduction <add>, %248, %cst_67 [2] : vector<8x8x32xf32> to vector<8x8xf32>
    %cst_68 = arith.constant dense<0xFF800000> : vector<8xf32>
    %250 = vector.multi_reduction <maximumf>, %249, %cst_68 [1] : vector<8x8xf32> to vector<8xf32>
    %251 = vector.shape_cast %250 : vector<8xf32> to vector<8x1xf32>
    %252 = vector.broadcast %251 : vector<8x1xf32> to vector<8x8xf32>
    %253 = arith.subf %249, %252 : vector<8x8xf32>
    %254 = math.exp %253 : vector<8x8xf32>
    %cst_69 = arith.constant dense<0.000000e+00> : vector<8xf32>
    %255 = vector.multi_reduction <add>, %254, %cst_69 [1] : vector<8x8xf32> to vector<8xf32>
    %256 = vector.shape_cast %255 : vector<8xf32> to vector<8x1xf32>
    %257 = tpu.reciprocal %256 {approx = true} : vector<8x1xf32> -> vector<8x1xf32>
    %258 = vector.broadcast %257 : vector<8x1xf32> to vector<8x8xf32>
    %259 = arith.mulf %254, %258 : vector<8x8xf32>
    %260 = vector.shape_cast %259 : vector<8x8xf32> to vector<8x8x1xf32>
    %261 = vector.broadcast %260 : vector<8x8x1xf32> to vector<8x8x32xf32>
    %262 = arith.mulf %243, %261 : vector<8x8x32xf32>
    %cst_70 = arith.constant dense<0.000000e+00> : vector<8x32xf32>
    %263 = vector.multi_reduction <add>, %262, %cst_70 [1] : vector<8x8x32xf32> to vector<8x32xf32>
    %c0_71 = arith.constant 0 : index
    %c0_72 = arith.constant 0 : index
    %264 = vector.load %arg5[%c0_71, %c0_72] : memref<32x128xf32, #tpu.memory_space<vmem>>, vector<32x128xf32>
    %cst_73 = arith.constant dense<0.000000e+00> : vector<8x128xf32>
    %265 = tpu.matmul %263, %264, %cst_73 {dimension_numbers = #tpu.dot_dimension_numbers<[1], [0], [0], [1], [0, 0, 1, 1], [], []>} : vector<8x32xf32>, vector<32x128xf32>, vector<8x128xf32> -> vector<8x128xf32>
    %c0_74 = arith.constant 0 : index
    %c0_75 = arith.constant 0 : index
    %266 = vector.load %arg6[%c0_74, %c0_75] : memref<1x128xf32, #tpu.memory_space<vmem>>, vector<1x128xf32>
    %267 = vector.broadcast %266 : vector<1x128xf32> to vector<8x128xf32>
    %268 = arith.addf %265, %267 : vector<8x128xf32>
    %c0_76 = arith.constant 0 : index
    %c0_77 = arith.constant 0 : index
    %269 = vector.load %arg7[%c0_76, %c0_77] : memref<8x128xf32, #tpu.memory_space<vmem>>, vector<8x128xf32>
    %270 = arith.addf %268, %269 : vector<8x128xf32>
    %c0_78 = arith.constant 0 : index
    %c0_79 = arith.constant 0 : index
    %271 = vector.load %arg8[%c0_78, %c0_79] : memref<8x128xf32, #tpu.memory_space<vmem>>, vector<8x128xf32>
    tpu.vector_store %arg8[%c0_78, %c0_79], %270 {strides = array<i32>} : memref<8x128xf32, #tpu.memory_space<vmem>>, vector<8x128xf32>,
    return
  }
}

</mosaic_0001>

<llo_original>
// kernel: tpu_custom_call.1
$region0: #{tpu_custom_call.1}
  #allocation0 [shape = 'u32[]', space=smem, size = 0x4, offset = 0x4, fixed_abs, tag = 'smem constant byte address 0x4 - core index']
  #allocation1 [shape = 'u32[144,128]{1,0:T(1,128)}', space=vmem, size = 0x12000, scoped, tag = 'internal scratch']
  %s0 = inlined_call_operand.vmem [shape: f32[64,32], index: 0, kind: input, shape index: {}]
  %s1 = inlined_call_operand.vmem [shape: f32[32,128], index: 1, kind: input, shape index: {}]
  %s2 = inlined_call_operand.vmem [shape: f32[32,128], index: 2, kind: input, shape index: {}]
  %s3 = inlined_call_operand.vmem [shape: f32[1,128], index: 3, kind: input, shape index: {}]
  %s4 = inlined_call_operand.hbm [shape: f32[1,32], index: 4, kind: input, shape index: {}]
  %s5 = inlined_call_operand.vmem [shape: f32[32,128], index: 5, kind: input, shape index: {}]
  %s6 = inlined_call_operand.vmem [shape: f32[1,128], index: 6, kind: input, shape index: {}]
  %s7 = inlined_call_operand.vmem [shape: f32[8,128], index: 7, kind: input, shape index: {}]
  %s8 = inlined_call_operand.hbm [shape: f32[8,128], index: 8, kind: output, shape index: {}]
  %s9 = sld [smem:[#allocation0]]
  $region46: #{tpu_custom_call.1} parent=0
    _
  %s11 = ssub.s32 1, %s9
  %s12 = scalar_select 0, %s11, %s9
  $region1: #{tpu_custom_call.1} parent=0
    #allocation2 [shape = 'u8[512]{0}', space=vmem, size = 0x400, scoped, tag = 'input window, operand 4, single buffered']
    #allocation3 [shape = 's32[1]{0}', space=sflag, size = 0x4, scoped, tag = 'scoped memory for tpu_custom_call.1']
    #allocation4 [shape = 's32[1]{0}', space=sflag, size = 0x4, scoped, tag = 'scoped memory for tpu_custom_call.1']
    #allocation5 [shape = 'u8[4096]{0}', space=vmem, size = 0x1000, scoped, tag = 'output window, operand 0, single buffered']
    %13 = vsyncpa [#allocation3], 0
    %14 = vsyncpa [#allocation4], 0
    // Predicated region
    $region2: #{tpu_custom_call.1} parent=1 // pred_check
      _
    $region3: #{tpu_custom_call.1} parent=1 // pred_check_branch
      %16 = sbr.rel (0) target = $region5
    $region4: #{tpu_custom_call.1} parent=1 // pred_region
      _
    $region5: #{tpu_custom_call.1} parent=1 // pred_fallthru
      _
    // Predicated region
    $region6: #{tpu_custom_call.1} parent=1 // pred_check
      _
    $region7: #{tpu_custom_call.1} parent=1 // pred_check_branch
      %18 = sbr.rel (0) target = $region9
    $region8: #{tpu_custom_call.1} parent=1 // pred_region
      _
    $region9: #{tpu_custom_call.1} parent=1 // pred_fallthru
      _
    // Predicated region
    $region10: #{tpu_custom_call.1} parent=1 // pred_check
      _
    $region11: #{tpu_custom_call.1} parent=1 // pred_check_branch
      %20 = sbr.rel (0) target = $region13
    $region12: #{tpu_custom_call.1} parent=1 // pred_region
      _
    $region13: #{tpu_custom_call.1} parent=1 // pred_fallthru
      _
    // Predicated region
    $region14: #{tpu_custom_call.1} parent=1 // pred_check
      _
    $region15: #{tpu_custom_call.1} parent=1 // pred_check_branch
      %22 = sbr.rel (0) target = $region17
    $region16: #{tpu_custom_call.1} parent=1 // pred_region
      _
    $region17: #{tpu_custom_call.1} parent=1 // pred_fallthru
      _
    // Predicated region
    $region18: #{tpu_custom_call.1} parent=1 // pred_check
      _
    $region19: #{tpu_custom_call.1} parent=1 // pred_check_branch
      %24 = sbr.rel (0) target = $region21
    $region20: #{tpu_custom_call.1} parent=1 // pred_region
      %s26 = ssub.s32 16, 16
      %27 = vsyncadd [#allocation3], %s26
      %s29 = sshll.u32 [#allocation2], 4
      %s30 = int_to_ptr.vmem [resolvable:$true] %s29
      %32 = dma.hbm_to_vmem [thread:$0]  %s4, 16, %s30, [#allocation3]
    $region21: #{tpu_custom_call.1} parent=1 // pred_fallthru
      _
    // Predicated region
    $region22: #{tpu_custom_call.1} parent=1 // pred_check
      _
    $region23: #{tpu_custom_call.1} parent=1 // pred_check_branch
      %34 = sbr.rel (0) target = $region25
    $region24: #{tpu_custom_call.1} parent=1 // pred_region
      _
    $region25: #{tpu_custom_call.1} parent=1 // pred_fallthru
      _
    // Predicated region
    $region26: #{tpu_custom_call.1} parent=1 // pred_check
      _
    $region27: #{tpu_custom_call.1} parent=1 // pred_check_branch
      %36 = sbr.rel (0) target = $region29
    $region28: #{tpu_custom_call.1} parent=1 // pred_region
      _
    $region29: #{tpu_custom_call.1} parent=1 // pred_fallthru
      _
    // Predicated region
    $region30: #{tpu_custom_call.1} parent=1 // pred_check
      _
    $region31: #{tpu_custom_call.1} parent=1 // pred_check_branch
      %38 = sbr.rel (0) target = $region33
    $region32: #{tpu_custom_call.1} parent=1 // pred_region
      _
    $region33: #{tpu_custom_call.1} parent=1 // pred_fallthru
      _
    // Predicated region
    $region34: #{tpu_custom_call.1} parent=1 // pred_check
      _
    $region35: #{tpu_custom_call.1} parent=1 // pred_check_branch
      %40 = sbr.rel (0) target = $region37
    $region36: #{tpu_custom_call.1} parent=1 // pred_region
      %41 = dma.done [#allocation3], 16
    $region37: #{tpu_custom_call.1} parent=1 // pred_fallthru
      _
    %v42 = vld [vmem:[%s0] sm:$0xff]
    %v43 = vld [vmem:[%s0 + $0x8] sm:$0xff]
    %v44 = vld [vmem:[%s0 + $0x10] sm:$0xff]
    %v45 = vld [vmem:[%s0 + $0x18] sm:$0xff]
    %v46 = vld [vmem:[%s0 + $0x20] sm:$0xff]
    %v47 = vld [vmem:[%s0 + $0x28] sm:$0xff]
    %v48 = vld [vmem:[%s0 + $0x30] sm:$0xff]
    %v49 = vld [vmem:[%s0 + $0x38] sm:$0xff]
    %v50 = vld [vmem:[%s1] sm:$0xff]
    %v51 = vld [vmem:[%s1 + $0x8] sm:$0xff]
    %v52 = vld [vmem:[%s1 + $0x10] sm:$0xff]
    %v53 = vld [vmem:[%s1 + $0x18] sm:$0xff]
    %v54 = vld [vmem:[%s3] sm:$0x1]
    %v56 = vlaneseq
    %v57 = vshrl.u32 %v56, 7
    %v58 = vsub.s32 0, %v57
    %v59 = vrot.slane %v54, %v58
    %vm61 = vcmask 261120
    %v63 = vsel %vm61, %v42, 0
    %v66 = vsel %vm61, %v43, 0
    %v69 = vsel %vm61, %v44, 0
    %v72 = vsel %vm61, %v45, 0
    %v75 = vsel %vm61, %v46, 0
    %v78 = vsel %vm61, %v47, 0
    %v81 = vsel %vm61, %v48, 0
    %v84 = vsel %vm61, %v49, 0
    %86 = vmatprep.subr.mxu0 0.0
    %87 = vmatpush1.msra.mxu0 0.0
    %88 = vmatprep.subr.mxu0 0.0
    %89 = vmatpush1.msra.mxu0 0.0
    %90 = vmatprep.subr.mxu0 0.0
    %91 = vmatpush1.msra.mxu0 0.0
    %92 = vmatprep.subr.mxu0 0.0
    %93 = vmatpush1.msra.mxu0 0.0
    %94 = vmatprep.subr.mxu0 0.0
    %95 = vmatpush1.msra.mxu0 0.0
    %96 = vmatprep.subr.mxu0 0.0
    %97 = vmatpush1.msra.mxu0 0.0
    %98 = vmatprep.subr.mxu0 0.0
    %99 = vmatpush1.msra.mxu0 0.0
    %100 = vmatprep.subr.mxu0 0.0
    %101 = vmatpush1.msra.mxu0 0.0
    %102 = vmatprep.subr.mxu0 0.0
    %103 = vmatpush1.msra.mxu0 0.0
    %104 = vmatprep.subr.mxu0 0.0
    %105 = vmatpush1.msra.mxu0 0.0
    %106 = vmatprep.subr.mxu0 0.0
    %107 = vmatpush1.msra.mxu0 0.0
    %108 = vmatprep.subr.mxu0 0.0
    %109 = vmatpush1.msra.mxu0 0.0
    %110 = vmatprep.subr.mxu0 0.0
    %111 = vmatpush1.msra.mxu0 %v53
    %112 = vmatprep.subr.mxu0 0.0
    %113 = vmatpush1.msra.mxu0 %v52
    %114 = vmatprep.subr.mxu0 0.0
    %115 = vmatpush1.msra.mxu0 %v51
    %116 = vmatprep.subr.mxu0 0.0
    %117 = vmatpush1.msra.mxu0 %v50
    %118 = vmatprep.subr.mxu0 0.0
    %119 = vmatpush2.msra.mxu0 0.0
    %120 = vmatprep.subr.mxu0 0.0
    %121 = vmatpush2.msra.mxu0 0.0
    %122 = vmatprep.subr.mxu0 0.0
    %123 = vmatpush2.msra.mxu0 0.0
    %124 = vmatprep.subr.mxu0 0.0
    %125 = vmatpush2.msra.mxu0 0.0
    %126 = vmatprep.subr.mxu0 0.0
    %127 = vmatpush2.msra.mxu0 0.0
    %128 = vmatprep.subr.mxu0 0.0
    %129 = vmatpush2.msra.mxu0 0.0
    %130 = vmatprep.subr.mxu0 0.0
    %131 = vmatpush2.msra.mxu0 0.0
    %132 = vmatprep.subr.mxu0 0.0
    %133 = vmatpush2.msra.mxu0 0.0
    %134 = vmatprep.subr.mxu0 0.0
    %135 = vmatpush2.msra.mxu0 0.0
    %136 = vmatprep.subr.mxu0 0.0
    %137 = vmatpush2.msra.mxu0 0.0
    %138 = vmatprep.subr.mxu0 0.0
    %139 = vmatpush2.msra.mxu0 0.0
    %140 = vmatprep.subr.mxu0 0.0
    %141 = vmatpush2.msra.mxu0 0.0
    %142 = vmatprep.subr.mxu0 0.0
    %143 = vmatpush2.msra.mxu0 0.0
    %144 = vmatprep.subr.mxu0 0.0
    %145 = vmatpush2.msra.mxu0 0.0
    %146 = vmatprep.subr.mxu0 0.0
    %147 = vmatpush2.msra.mxu0 0.0
    %148 = vmatprep.subr.mxu0 0.0
    %149 = vmatpush2.msra.mxu0 0.0
    %150 = vmatprep.mubr.f32.mxu0 0.0
    %151 = vmatmul.mubr.f32.gmra.mxu0 %v63
    %v152 = vpop.f32.mrf.mxu0
    %v153 = vadd.f32 %v59, %v152
    %v154 = vpop.f32.mrf.mxu0
    %155 = vmatprep.mubr.f32.mxu0 0.0
    %156 = vmatmul.mubr.f32.gmra.mxu0 %v66
    %v157 = vpop.f32.mrf.mxu0
    %v158 = vadd.f32 %v59, %v157
    %v159 = vpop.f32.mrf.mxu0
    %160 = vmatprep.mubr.f32.mxu0 0.0
    %161 = vmatmul.mubr.f32.gmra.mxu0 %v69
    %v162 = vpop.f32.mrf.mxu0
    %v163 = vadd.f32 %v59, %v162
    %v164 = vpop.f32.mrf.mxu0
    %165 = vmatprep.mubr.f32.mxu0 0.0
    %166 = vmatmul.mubr.f32.gmra.mxu0 %v72
    %v167 = vpop.f32.mrf.mxu0
    %v168 = vadd.f32 %v59, %v167
    %v169 = vpop.f32.mrf.mxu0
    %170 = vmatprep.mubr.f32.mxu0 0.0
    %171 = vmatmul.mubr.f32.gmra.mxu0 %v75
    %v172 = vpop.f32.mrf.mxu0
    %v173 = vadd.f32 %v59, %v172
    %v174 = vpop.f32.mrf.mxu0
    %175 = vmatprep.mubr.f32.mxu0 0.0
    %176 = vmatmul.mubr.f32.gmra.mxu0 %v78
    %v177 = vpop.f32.mrf.mxu0
    %v178 = vadd.f32 %v59, %v177
    %v179 = vpop.f32.mrf.mxu0
    %180 = vmatprep.mubr.f32.mxu0 0.0
    %181 = vmatmul.mubr.f32.gmra.mxu0 %v81
    %v182 = vpop.f32.mrf.mxu0
    %v183 = vadd.f32 %v59, %v182
    %v184 = vpop.f32.mrf.mxu0
    %185 = vmatprep.mubr.f32.mxu0 0.0
    %186 = vmatmul.mubr.f32.gmra.mxu0 %v84
    %v187 = vpop.f32.mrf.mxu0
    %v188 = vadd.f32 %v59, %v187
    %v189 = vpop.f32.mrf.mxu0
    %190 = vdwg.mxu0
    %v191 = vld [vmem:[%s2] sm:$0xff]
    %v192 = vld [vmem:[%s2 + $0x8] sm:$0xff]
    %v193 = vld [vmem:[%s2 + $0x10] sm:$0xff]
    %v194 = vld [vmem:[%s2 + $0x18] sm:$0xff]
    %v196 = vsel %vm61, 0.0, 0
    %198 = vmatprep.subr.mxu0 0.0
    %199 = vmatpush1.msra.mxu0 0.0
    %200 = vmatprep.subr.mxu0 0.0
    %201 = vmatpush1.msra.mxu0 0.0
    %202 = vmatprep.subr.mxu0 0.0
    %203 = vmatpush1.msra.mxu0 0.0
    %204 = vmatprep.subr.mxu0 0.0
    %205 = vmatpush1.msra.mxu0 0.0
    %206 = vmatprep.subr.mxu0 0.0
    %207 = vmatpush1.msra.mxu0 0.0
    %208 = vmatprep.subr.mxu0 0.0
    %209 = vmatpush1.msra.mxu0 0.0
    %210 = vmatprep.subr.mxu0 0.0
    %211 = vmatpush1.msra.mxu0 0.0
    %212 = vmatprep.subr.mxu0 0.0
    %213 = vmatpush1.msra.mxu0 0.0
    %214 = vmatprep.subr.mxu0 0.0
    %215 = vmatpush1.msra.mxu0 0.0
    %216 = vmatprep.subr.mxu0 0.0
    %217 = vmatpush1.msra.mxu0 0.0
    %218 = vmatprep.subr.mxu0 0.0
    %219 = vmatpush1.msra.mxu0 0.0
    %220 = vmatprep.subr.mxu0 0.0
    %221 = vmatpush1.msra.mxu0 0.0
    %222 = vmatprep.subr.mxu0 0.0
    %223 = vmatpush1.msra.mxu0 %v194
    %224 = vmatprep.subr.mxu0 0.0
    %225 = vmatpush1.msra.mxu0 %v193
    %226 = vmatprep.subr.mxu0 0.0
    %227 = vmatpush1.msra.mxu0 %v192
    %228 = vmatprep.subr.mxu0 0.0
    %229 = vmatpush1.msra.mxu0 %v191
    %230 = vmatprep.subr.mxu0 0.0
    %231 = vmatpush2.msra.mxu0 0.0
    %232 = vmatprep.subr.mxu0 0.0
    %233 = vmatpush2.msra.mxu0 0.0
    %234 = vmatprep.subr.mxu0 0.0
    %235 = vmatpush2.msra.mxu0 0.0
    %236 = vmatprep.subr.mxu0 0.0
    %237 = vmatpush2.msra.mxu0 0.0
    %238 = vmatprep.subr.mxu0 0.0
    %239 = vmatpush2.msra.mxu0 0.0
    %240 = vmatprep.subr.mxu0 0.0
    %241 = vmatpush2.msra.mxu0 0.0
    %242 = vmatprep.subr.mxu0 0.0
    %243 = vmatpush2.msra.mxu0 0.0
    %244 = vmatprep.subr.mxu0 0.0
    %245 = vmatpush2.msra.mxu0 0.0
    %246 = vmatprep.subr.mxu0 0.0
    %247 = vmatpush2.msra.mxu0 0.0
    %248 = vmatprep.subr.mxu0 0.0
    %249 = vmatpush2.msra.mxu0 0.0
    %250 = vmatprep.subr.mxu0 0.0
    %251 = vmatpush2.msra.mxu0 0.0
    %252 = vmatprep.subr.mxu0 0.0
    %253 = vmatpush2.msra.mxu0 0.0
    %254 = vmatprep.subr.mxu0 0.0
    %255 = vmatpush2.msra.mxu0 0.0
    %256 = vmatprep.subr.mxu0 0.0
    %257 = vmatpush2.msra.mxu0 0.0
    %258 = vmatprep.subr.mxu0 0.0
    %259 = vmatpush2.msra.mxu0 0.0
    %260 = vmatprep.subr.mxu0 0.0
    %261 = vmatpush2.msra.mxu0 0.0
    %262 = vmatprep.mubr.f32.mxu0 0.0
    %263 = vmatmul.mubr.f32.gmra.mxu0 %v196
    %v264 = vpop.f32.mrf.mxu0
    %v265 = vadd.f32 0.0, %v264
    %v266 = vpop.f32.mrf.mxu0
    %267 = vdwg.mxu0
    %v268 = vadd.f32 %v153, %v265
    %v269 = vtanh.pop %v268
    %v270 = vmul.f32 %v269, 0.5
    %v271 = vadd.f32 %v270, 0.5
    %v272 = vmul.f32 %v271, 0.0
    %274 = vrot.lane.b32.xlu0 %v269, 32
    %v275 = vpop.permute.xlu0 %274
    %v277 = vmul.f32 %v271, %v275
    %279 = vrot.lane.b32.xlu0 %v277, 32
    %v280 = vpop.permute.xlu0 %279
    %v282 = vadd.f32 %v272, %v280
    %v283 = vtanh.pop %v282
    %285 = vrot.lane.b32.xlu0 %v283, 32
    %v286 = vpop.permute.xlu0 %285
    %v288 = vmul.f32 %v271, %v286
    %290 = vrot.lane.b32.xlu0 %v288, 64
    %v291 = vpop.permute.xlu0 %290
    %v292 = vsel %vm61, %v291, 0
    %294 = vmatprep.subr.mxu0 0.0
    %295 = vmatpush1.msra.mxu0 0.0
    %296 = vmatprep.subr.mxu0 0.0
    %297 = vmatpush1.msra.mxu0 0.0
    %298 = vmatprep.subr.mxu0 0.0
    %299 = vmatpush1.msra.mxu0 0.0
    %300 = vmatprep.subr.mxu0 0.0
    %301 = vmatpush1.msra.mxu0 0.0
    %302 = vmatprep.subr.mxu0 0.0
    %303 = vmatpush1.msra.mxu0 0.0
    %304 = vmatprep.subr.mxu0 0.0
    %305 = vmatpush1.msra.mxu0 0.0
    %306 = vmatprep.subr.mxu0 0.0
    %307 = vmatpush1.msra.mxu0 0.0
    %308 = vmatprep.subr.mxu0 0.0
    %309 = vmatpush1.msra.mxu0 0.0
    %310 = vmatprep.subr.mxu0 0.0
    %311 = vmatpush1.msra.mxu0 0.0
    %312 = vmatprep.subr.mxu0 0.0
    %313 = vmatpush1.msra.mxu0 0.0
    %314 = vmatprep.subr.mxu0 0.0
    %315 = vmatpush1.msra.mxu0 0.0
    %316 = vmatprep.subr.mxu0 0.0
    %317 = vmatpush1.msra.mxu0 0.0
    %318 = vmatprep.subr.mxu0 0.0
    %319 = vmatpush1.msra.mxu0 %v194
    %320 = vmatprep.subr.mxu0 0.0
    %321 = vmatpush1.msra.mxu0 %v193
    %322 = vmatprep.subr.mxu0 0.0
    %323 = vmatpush1.msra.mxu0 %v192
    %324 = vmatprep.subr.mxu0 0.0
    %325 = vmatpush1.msra.mxu0 %v191
    %326 = vmatprep.subr.mxu0 0.0
    %327 = vmatpush2.msra.mxu0 0.0
    %328 = vmatprep.subr.mxu0 0.0
    %329 = vmatpush2.msra.mxu0 0.0
    %330 = vmatprep.subr.mxu0 0.0
    %331 = vmatpush2.msra.mxu0 0.0
    %332 = vmatprep.subr.mxu0 0.0
    %333 = vmatpush2.msra.mxu0 0.0
    %334 = vmatprep.subr.mxu0 0.0
    %335 = vmatpush2.msra.mxu0 0.0
    %336 = vmatprep.subr.mxu0 0.0
    %337 = vmatpush2.msra.mxu0 0.0
    %338 = vmatprep.subr.mxu0 0.0
    %339 = vmatpush2.msra.mxu0 0.0
    %340 = vmatprep.subr.mxu0 0.0
    %341 = vmatpush2.msra.mxu0 0.0
    %342 = vmatprep.subr.mxu0 0.0
    %343 = vmatpush2.msra.mxu0 0.0
    %344 = vmatprep.subr.mxu0 0.0
    %345 = vmatpush2.msra.mxu0 0.0
    %346 = vmatprep.subr.mxu0 0.0
    %347 = vmatpush2.msra.mxu0 0.0
    %348 = vmatprep.subr.mxu0 0.0
    %349 = vmatpush2.msra.mxu0 0.0
    %350 = vmatprep.subr.mxu0 0.0
    %351 = vmatpush2.msra.mxu0 0.0
    %352 = vmatprep.subr.mxu0 0.0
    %353 = vmatpush2.msra.mxu0 0.0
    %354 = vmatprep.subr.mxu0 0.0
    %355 = vmatpush2.msra.mxu0 0.0
    %356 = vmatprep.subr.mxu0 0.0
    %357 = vmatpush2.msra.mxu0 0.0
    %358 = vmatprep.mubr.f32.mxu0 0.0
    %359 = vmatmul.mubr.f32.gmra.mxu0 %v292
    %v360 = vpop.f32.mrf.mxu0
    %v361 = vadd.f32 0.0, %v360
    %v362 = vpop.f32.mrf.mxu0
    %363 = vdwg.mxu0
    %v364 = vadd.f32 %v158, %v361
    %v365 = vtanh.pop %v364
    %v366 = vmul.f32 %v365, 0.5
    %v367 = vadd.f32 %v366, 0.5
    %v368 = vmul.f32 %v367, %v282
    %370 = vrot.lane.b32.xlu0 %v365, 32
    %v371 = vpop.permute.xlu0 %370
    %v373 = vmul.f32 %v367, %v371
    %375 = vrot.lane.b32.xlu0 %v373, 32
    %v376 = vpop.permute.xlu0 %375
    %v378 = vadd.f32 %v368, %v376
    %v379 = vtanh.pop %v378
    %381 = vrot.lane.b32.xlu0 %v379, 32
    %v382 = vpop.permute.xlu0 %381
    %v384 = vmul.f32 %v367, %v382
    %386 = vrot.lane.b32.xlu0 %v384, 64
    %v387 = vpop.permute.xlu0 %386
    %v388 = vsel %vm61, %v387, 0
    %390 = vmatprep.subr.mxu0 0.0
    %391 = vmatpush1.msra.mxu0 0.0
    %392 = vmatprep.subr.mxu0 0.0
    %393 = vmatpush1.msra.mxu0 0.0
    %394 = vmatprep.subr.mxu0 0.0
    %395 = vmatpush1.msra.mxu0 0.0
    %396 = vmatprep.subr.mxu0 0.0
    %397 = vmatpush1.msra.mxu0 0.0
    %398 = vmatprep.subr.mxu0 0.0
    %399 = vmatpush1.msra.mxu0 0.0
    %400 = vmatprep.subr.mxu0 0.0
    %401 = vmatpush1.msra.mxu0 0.0
    %402 = vmatprep.subr.mxu0 0.0
    %403 = vmatpush1.msra.mxu0 0.0
    %404 = vmatprep.subr.mxu0 0.0
    %405 = vmatpush1.msra.mxu0 0.0
    %406 = vmatprep.subr.mxu0 0.0
    %407 = vmatpush1.msra.mxu0 0.0
    %408 = vmatprep.subr.mxu0 0.0
    %409 = vmatpush1.msra.mxu0 0.0
    %410 = vmatprep.subr.mxu0 0.0
    %411 = vmatpush1.msra.mxu0 0.0
    %412 = vmatprep.subr.mxu0 0.0
    %413 = vmatpush1.msra.mxu0 0.0
    %414 = vmatprep.subr.mxu0 0.0
    %415 = vmatpush1.msra.mxu0 %v194
    %416 = vmatprep.subr.mxu0 0.0
    %417 = vmatpush1.msra.mxu0 %v193
    %418 = vmatprep.subr.mxu0 0.0
    %419 = vmatpush1.msra.mxu0 %v192
    %420 = vmatprep.subr.mxu0 0.0
    %421 = vmatpush1.msra.mxu0 %v191
    %422 = vmatprep.subr.mxu0 0.0
    %423 = vmatpush2.msra.mxu0 0.0
    %424 = vmatprep.subr.mxu0 0.0
    %425 = vmatpush2.msra.mxu0 0.0
    %426 = vmatprep.subr.mxu0 0.0
    %427 = vmatpush2.msra.mxu0 0.0
    %428 = vmatprep.subr.mxu0 0.0
    %429 = vmatpush2.msra.mxu0 0.0
    %430 = vmatprep.subr.mxu0 0.0
    %431 = vmatpush2.msra.mxu0 0.0
    %432 = vmatprep.subr.mxu0 0.0
    %433 = vmatpush2.msra.mxu0 0.0
    %434 = vmatprep.subr.mxu0 0.0
    %435 = vmatpush2.msra.mxu0 0.0
    %436 = vmatprep.subr.mxu0 0.0
    %437 = vmatpush2.msra.mxu0 0.0
    %438 = vmatprep.subr.mxu0 0.0
    %439 = vmatpush2.msra.mxu0 0.0
    %440 = vmatprep.subr.mxu0 0.0
    %441 = vmatpush2.msra.mxu0 0.0
    %442 = vmatprep.subr.mxu0 0.0
    %443 = vmatpush2.msra.mxu0 0.0
    %444 = vmatprep.subr.mxu0 0.0
    %445 = vmatpush2.msra.mxu0 0.0
    %446 = vmatprep.subr.mxu0 0.0
    %447 = vmatpush2.msra.mxu0 0.0
    %448 = vmatprep.subr.mxu0 0.0
    %449 = vmatpush2.msra.mxu0 0.0
    %450 = vmatprep.subr.mxu0 0.0
    %451 = vmatpush2.msra.mxu0 0.0
    %452 = vmatprep.subr.mxu0 0.0
    %453 = vmatpush2.msra.mxu0 0.0
    %454 = vmatprep.mubr.f32.mxu0 0.0
    %455 = vmatmul.mubr.f32.gmra.mxu0 %v388
    %v456 = vpop.f32.mrf.mxu0
    %v457 = vadd.f32 0.0, %v456
    %v458 = vpop.f32.mrf.mxu0
    %459 = vdwg.mxu0
    %v460 = vadd.f32 %v163, %v457
    %v461 = vtanh.pop %v460
    %v462 = vmul.f32 %v461, 0.5
    %v463 = vadd.f32 %v462, 0.5
    %v464 = vmul.f32 %v463, %v378
    %466 = vrot.lane.b32.xlu0 %v461, 32
    %v467 = vpop.permute.xlu0 %466
    %v469 = vmul.f32 %v463, %v467
    %471 = vrot.lane.b32.xlu0 %v469, 32
    %v472 = vpop.permute.xlu0 %471
    %v474 = vadd.f32 %v464, %v472
    %v475 = vtanh.pop %v474
    %477 = vrot.lane.b32.xlu0 %v475, 32
    %v478 = vpop.permute.xlu0 %477
    %v480 = vmul.f32 %v463, %v478
    %482 = vrot.lane.b32.xlu0 %v480, 64
    %v483 = vpop.permute.xlu0 %482
    %v484 = vsel %vm61, %v483, 0
    %486 = vmatprep.subr.mxu0 0.0
    %487 = vmatpush1.msra.mxu0 0.0
    %488 = vmatprep.subr.mxu0 0.0
    %489 = vmatpush1.msra.mxu0 0.0
    %490 = vmatprep.subr.mxu0 0.0
    %491 = vmatpush1.msra.mxu0 0.0
    %492 = vmatprep.subr.mxu0 0.0
    %493 = vmatpush1.msra.mxu0 0.0
    %494 = vmatprep.subr.mxu0 0.0
    %495 = vmatpush1.msra.mxu0 0.0
    %496 = vmatprep.subr.mxu0 0.0
    %497 = vmatpush1.msra.mxu0 0.0
    %498 = vmatprep.subr.mxu0 0.0
    %499 = vmatpush1.msra.mxu0 0.0
    %500 = vmatprep.subr.mxu0 0.0
    %501 = vmatpush1.msra.mxu0 0.0
    %502 = vmatprep.subr.mxu0 0.0
    %503 = vmatpush1.msra.mxu0 0.0
    %504 = vmatprep.subr.mxu0 0.0
    %505 = vmatpush1.msra.mxu0 0.0
    %506 = vmatprep.subr.mxu0 0.0
    %507 = vmatpush1.msra.mxu0 0.0
    %508 = vmatprep.subr.mxu0 0.0
    %509 = vmatpush1.msra.mxu0 0.0
    %510 = vmatprep.subr.mxu0 0.0
    %511 = vmatpush1.msra.mxu0 %v194
    %512 = vmatprep.subr.mxu0 0.0
    %513 = vmatpush1.msra.mxu0 %v193
    %514 = vmatprep.subr.mxu0 0.0
    %515 = vmatpush1.msra.mxu0 %v192
    %516 = vmatprep.subr.mxu0 0.0
    %517 = vmatpush1.msra.mxu0 %v191
    %518 = vmatprep.subr.mxu0 0.0
    %519 = vmatpush2.msra.mxu0 0.0
    %520 = vmatprep.subr.mxu0 0.0
    %521 = vmatpush2.msra.mxu0 0.0
    %522 = vmatprep.subr.mxu0 0.0
    %523 = vmatpush2.msra.mxu0 0.0
    %524 = vmatprep.subr.mxu0 0.0
    %525 = vmatpush2.msra.mxu0 0.0
    %526 = vmatprep.subr.mxu0 0.0
    %527 = vmatpush2.msra.mxu0 0.0
    %528 = vmatprep.subr.mxu0 0.0
    %529 = vmatpush2.msra.mxu0 0.0
    %530 = vmatprep.subr.mxu0 0.0
    %531 = vmatpush2.msra.mxu0 0.0
    %532 = vmatprep.subr.mxu0 0.0
    %533 = vmatpush2.msra.mxu0 0.0
    %534 = vmatprep.subr.mxu0 0.0
    %535 = vmatpush2.msra.mxu0 0.0
    %536 = vmatprep.subr.mxu0 0.0
    %537 = vmatpush2.msra.mxu0 0.0
    %538 = vmatprep.subr.mxu0 0.0
    %539 = vmatpush2.msra.mxu0 0.0
    %540 = vmatprep.subr.mxu0 0.0
    %541 = vmatpush2.msra.mxu0 0.0
    %542 = vmatprep.subr.mxu0 0.0
    %543 = vmatpush2.msra.mxu0 0.0
    %544 = vmatprep.subr.mxu0 0.0
    %545 = vmatpush2.msra.mxu0 0.0
    %546 = vmatprep.subr.mxu0 0.0
    %547 = vmatpush2.msra.mxu0 0.0
    %548 = vmatprep.subr.mxu0 0.0
    %549 = vmatpush2.msra.mxu0 0.0
    %550 = vmatprep.mubr.f32.mxu0 0.0
    %551 = vmatmul.mubr.f32.gmra.mxu0 %v484
    %v552 = vpop.f32.mrf.mxu0
    %v553 = vadd.f32 0.0, %v552
    %v554 = vpop.f32.mrf.mxu0
    %555 = vdwg.mxu0
    %v556 = vadd.f32 %v168, %v553
    %v557 = vtanh.pop %v556
    %v558 = vmul.f32 %v557, 0.5
    %v559 = vadd.f32 %v558, 0.5
    %v560 = vmul.f32 %v559, %v474
    %562 = vrot.lane.b32.xlu0 %v557, 32
    %v563 = vpop.permute.xlu0 %562
    %v565 = vmul.f32 %v559, %v563
    %567 = vrot.lane.b32.xlu0 %v565, 32
    %v568 = vpop.permute.xlu0 %567
    %v570 = vadd.f32 %v560, %v568
    %v571 = vtanh.pop %v570
    %573 = vrot.lane.b32.xlu0 %v571, 32
    %v574 = vpop.permute.xlu0 %573
    %v576 = vmul.f32 %v559, %v574
    %578 = vrot.lane.b32.xlu0 %v576, 64
    %v579 = vpop.permute.xlu0 %578
    %v580 = vsel %vm61, %v579, 0
    %582 = vmatprep.subr.mxu0 0.0
    %583 = vmatpush1.msra.mxu0 0.0
    %584 = vmatprep.subr.mxu0 0.0
    %585 = vmatpush1.msra.mxu0 0.0
    %586 = vmatprep.subr.mxu0 0.0
    %587 = vmatpush1.msra.mxu0 0.0
    %588 = vmatprep.subr.mxu0 0.0
    %589 = vmatpush1.msra.mxu0 0.0
    %590 = vmatprep.subr.mxu0 0.0
    %591 = vmatpush1.msra.mxu0 0.0
    %592 = vmatprep.subr.mxu0 0.0
    %593 = vmatpush1.msra.mxu0 0.0
    %594 = vmatprep.subr.mxu0 0.0
    %595 = vmatpush1.msra.mxu0 0.0
    %596 = vmatprep.subr.mxu0 0.0
    %597 = vmatpush1.msra.mxu0 0.0
    %598 = vmatprep.subr.mxu0 0.0
    %599 = vmatpush1.msra.mxu0 0.0
    %600 = vmatprep.subr.mxu0 0.0
    %601 = vmatpush1.msra.mxu0 0.0
    %602 = vmatprep.subr.mxu0 0.0
    %603 = vmatpush1.msra.mxu0 0.0
    %604 = vmatprep.subr.mxu0 0.0
    %605 = vmatpush1.msra.mxu0 0.0
    %606 = vmatprep.subr.mxu0 0.0
    %607 = vmatpush1.msra.mxu0 %v194
    %608 = vmatprep.subr.mxu0 0.0
    %609 = vmatpush1.msra.mxu0 %v193
    %610 = vmatprep.subr.mxu0 0.0
    %611 = vmatpush1.msra.mxu0 %v192
    %612 = vmatprep.subr.mxu0 0.0
    %613 = vmatpush1.msra.mxu0 %v191
    %614 = vmatprep.subr.mxu0 0.0
    %615 = vmatpush2.msra.mxu0 0.0
    %616 = vmatprep.subr.mxu0 0.0
    %617 = vmatpush2.msra.mxu0 0.0
    %618 = vmatprep.subr.mxu0 0.0
    %619 = vmatpush2.msra.mxu0 0.0
    %620 = vmatprep.subr.mxu0 0.0
    %621 = vmatpush2.msra.mxu0 0.0
    %622 = vmatprep.subr.mxu0 0.0
    %623 = vmatpush2.msra.mxu0 0.0
    %624 = vmatprep.subr.mxu0 0.0
    %625 = vmatpush2.msra.mxu0 0.0
    %626 = vmatprep.subr.mxu0 0.0
    %627 = vmatpush2.msra.mxu0 0.0
    %628 = vmatprep.subr.mxu0 0.0
    %629 = vmatpush2.msra.mxu0 0.0
    %630 = vmatprep.subr.mxu0 0.0
    %631 = vmatpush2.msra.mxu0 0.0
    %632 = vmatprep.subr.mxu0 0.0
    %633 = vmatpush2.msra.mxu0 0.0
    %634 = vmatprep.subr.mxu0 0.0
    %635 = vmatpush2.msra.mxu0 0.0
    %636 = vmatprep.subr.mxu0 0.0
    %637 = vmatpush2.msra.mxu0 0.0
    %638 = vmatprep.subr.mxu0 0.0
    %639 = vmatpush2.msra.mxu0 0.0
    %640 = vmatprep.subr.mxu0 0.0
    %641 = vmatpush2.msra.mxu0 0.0
    %642 = vmatprep.subr.mxu0 0.0
    %643 = vmatpush2.msra.mxu0 0.0
    %644 = vmatprep.subr.mxu0 0.0
    %645 = vmatpush2.msra.mxu0 0.0
    %646 = vmatprep.mubr.f32.mxu0 0.0
    %647 = vmatmul.mubr.f32.gmra.mxu0 %v580
    %v648 = vpop.f32.mrf.mxu0
    %v649 = vadd.f32 0.0, %v648
    %v650 = vpop.f32.mrf.mxu0
    %651 = vdwg.mxu0
    %v652 = vadd.f32 %v173, %v649
    %v653 = vtanh.pop %v652
    %v654 = vmul.f32 %v653, 0.5
    %v655 = vadd.f32 %v654, 0.5
    %v656 = vmul.f32 %v655, %v570
    %658 = vrot.lane.b32.xlu0 %v653, 32
    %v659 = vpop.permute.xlu0 %658
    %v661 = vmul.f32 %v655, %v659
    %663 = vrot.lane.b32.xlu0 %v661, 32
    %v664 = vpop.permute.xlu0 %663
    %v666 = vadd.f32 %v656, %v664
    %v667 = vtanh.pop %v666
    %669 = vrot.lane.b32.xlu0 %v667, 32
    %v670 = vpop.permute.xlu0 %669
    %v672 = vmul.f32 %v655, %v670
    %674 = vrot.lane.b32.xlu0 %v672, 64
    %v675 = vpop.permute.xlu0 %674
    %v676 = vsel %vm61, %v675, 0
    %678 = vmatprep.subr.mxu0 0.0
    %679 = vmatpush1.msra.mxu0 0.0
    %680 = vmatprep.subr.mxu0 0.0
    %681 = vmatpush1.msra.mxu0 0.0
    %682 = vmatprep.subr.mxu0 0.0
    %683 = vmatpush1.msra.mxu0 0.0
    %684 = vmatprep.subr.mxu0 0.0
    %685 = vmatpush1.msra.mxu0 0.0
    %686 = vmatprep.subr.mxu0 0.0
    %687 = vmatpush1.msra.mxu0 0.0
    %688 = vmatprep.subr.mxu0 0.0
    %689 = vmatpush1.msra.mxu0 0.0
    %690 = vmatprep.subr.mxu0 0.0
    %691 = vmatpush1.msra.mxu0 0.0
    %692 = vmatprep.subr.mxu0 0.0
    %693 = vmatpush1.msra.mxu0 0.0
    %694 = vmatprep.subr.mxu0 0.0
    %695 = vmatpush1.msra.mxu0 0.0
    %696 = vmatprep.subr.mxu0 0.0
    %697 = vmatpush1.msra.mxu0 0.0
    %698 = vmatprep.subr.mxu0 0.0
    %699 = vmatpush1.msra.mxu0 0.0
    %700 = vmatprep.subr.mxu0 0.0
    %701 = vmatpush1.msra.mxu0 0.0
    %702 = vmatprep.subr.mxu0 0.0
    %703 = vmatpush1.msra.mxu0 %v194
    %704 = vmatprep.subr.mxu0 0.0
    %705 = vmatpush1.msra.mxu0 %v193
    %706 = vmatprep.subr.mxu0 0.0
    %707 = vmatpush1.msra.mxu0 %v192
    %708 = vmatprep.subr.mxu0 0.0
    %709 = vmatpush1.msra.mxu0 %v191
    %710 = vmatprep.subr.mxu0 0.0
    %711 = vmatpush2.msra.mxu0 0.0
    %712 = vmatprep.subr.mxu0 0.0
    %713 = vmatpush2.msra.mxu0 0.0
    %714 = vmatprep.subr.mxu0 0.0
    %715 = vmatpush2.msra.mxu0 0.0
    %716 = vmatprep.subr.mxu0 0.0
    %717 = vmatpush2.msra.mxu0 0.0
    %718 = vmatprep.subr.mxu0 0.0
    %719 = vmatpush2.msra.mxu0 0.0
    %720 = vmatprep.subr.mxu0 0.0
    %721 = vmatpush2.msra.mxu0 0.0
    %722 = vmatprep.subr.mxu0 0.0
    %723 = vmatpush2.msra.mxu0 0.0
    %724 = vmatprep.subr.mxu0 0.0
    %725 = vmatpush2.msra.mxu0 0.0
    %726 = vmatprep.subr.mxu0 0.0
    %727 = vmatpush2.msra.mxu0 0.0
    %728 = vmatprep.subr.mxu0 0.0
    %729 = vmatpush2.msra.mxu0 0.0
    %730 = vmatprep.subr.mxu0 0.0
    %731 = vmatpush2.msra.mxu0 0.0
    %732 = vmatprep.subr.mxu0 0.0
    %733 = vmatpush2.msra.mxu0 0.0
    %734 = vmatprep.subr.mxu0 0.0
    %735 = vmatpush2.msra.mxu0 0.0
    %736 = vmatprep.subr.mxu0 0.0
    %737 = vmatpush2.msra.mxu0 0.0
    %738 = vmatprep.subr.mxu0 0.0
    %739 = vmatpush2.msra.mxu0 0.0
    %740 = vmatprep.subr.mxu0 0.0
    %741 = vmatpush2.msra.mxu0 0.0
    %742 = vmatprep.mubr.f32.mxu0 0.0
    %743 = vmatmul.mubr.f32.gmra.mxu0 %v676
    %v744 = vpop.f32.mrf.mxu0
    %v745 = vadd.f32 0.0, %v744
    %v746 = vpop.f32.mrf.mxu0
    %747 = vdwg.mxu0
    %v748 = vadd.f32 %v178, %v745
    %v749 = vtanh.pop %v748
    %v750 = vmul.f32 %v749, 0.5
    %v751 = vadd.f32 %v750, 0.5
    %v752 = vmul.f32 %v751, %v666
    %754 = vrot.lane.b32.xlu0 %v749, 32
    %v755 = vpop.permute.xlu0 %754
    %v757 = vmul.f32 %v751, %v755
    %759 = vrot.lane.b32.xlu0 %v757, 32
    %v760 = vpop.permute.xlu0 %759
    %v762 = vadd.f32 %v752, %v760
    %v763 = vtanh.pop %v762
    %765 = vrot.lane.b32.xlu0 %v763, 32
    %v766 = vpop.permute.xlu0 %765
    %v768 = vmul.f32 %v751, %v766
    %770 = vrot.lane.b32.xlu0 %v768, 64
    %v771 = vpop.permute.xlu0 %770
    %v772 = vsel %vm61, %v771, 0
    %774 = vmatprep.subr.mxu0 0.0
    %775 = vmatpush1.msra.mxu0 0.0
    %776 = vmatprep.subr.mxu0 0.0
    %777 = vmatpush1.msra.mxu0 0.0
    %778 = vmatprep.subr.mxu0 0.0
    %779 = vmatpush1.msra.mxu0 0.0
    %780 = vmatprep.subr.mxu0 0.0
    %781 = vmatpush1.msra.mxu0 0.0
    %782 = vmatprep.subr.mxu0 0.0
    %783 = vmatpush1.msra.mxu0 0.0
    %784 = vmatprep.subr.mxu0 0.0
    %785 = vmatpush1.msra.mxu0 0.0
    %786 = vmatprep.subr.mxu0 0.0
    %787 = vmatpush1.msra.mxu0 0.0
    %788 = vmatprep.subr.mxu0 0.0
    %789 = vmatpush1.msra.mxu0 0.0
    %790 = vmatprep.subr.mxu0 0.0
    %791 = vmatpush1.msra.mxu0 0.0
    %792 = vmatprep.subr.mxu0 0.0
    %793 = vmatpush1.msra.mxu0 0.0
    %794 = vmatprep.subr.mxu0 0.0
    %795 = vmatpush1.msra.mxu0 0.0
    %796 = vmatprep.subr.mxu0 0.0
    %797 = vmatpush1.msra.mxu0 0.0
    %798 = vmatprep.subr.mxu0 0.0
    %799 = vmatpush1.msra.mxu0 %v194
    %800 = vmatprep.subr.mxu0 0.0
    %801 = vmatpush1.msra.mxu0 %v193
    %802 = vmatprep.subr.mxu0 0.0
    %803 = vmatpush1.msra.mxu0 %v192
    %804 = vmatprep.subr.mxu0 0.0
    %805 = vmatpush1.msra.mxu0 %v191
    %806 = vmatprep.subr.mxu0 0.0
    %807 = vmatpush2.msra.mxu0 0.0
    %808 = vmatprep.subr.mxu0 0.0
    %809 = vmatpush2.msra.mxu0 0.0
    %810 = vmatprep.subr.mxu0 0.0
    %811 = vmatpush2.msra.mxu0 0.0
    %812 = vmatprep.subr.mxu0 0.0
    %813 = vmatpush2.msra.mxu0 0.0
    %814 = vmatprep.subr.mxu0 0.0
    %815 = vmatpush2.msra.mxu0 0.0
    %816 = vmatprep.subr.mxu0 0.0
    %817 = vmatpush2.msra.mxu0 0.0
    %818 = vmatprep.subr.mxu0 0.0
    %819 = vmatpush2.msra.mxu0 0.0
    %820 = vmatprep.subr.mxu0 0.0
    %821 = vmatpush2.msra.mxu0 0.0
    %822 = vmatprep.subr.mxu0 0.0
    %823 = vmatpush2.msra.mxu0 0.0
    %824 = vmatprep.subr.mxu0 0.0
    %825 = vmatpush2.msra.mxu0 0.0
    %826 = vmatprep.subr.mxu0 0.0
    %827 = vmatpush2.msra.mxu0 0.0
    %828 = vmatprep.subr.mxu0 0.0
    %829 = vmatpush2.msra.mxu0 0.0
    %830 = vmatprep.subr.mxu0 0.0
    %831 = vmatpush2.msra.mxu0 0.0
    %832 = vmatprep.subr.mxu0 0.0
    %833 = vmatpush2.msra.mxu0 0.0
    %834 = vmatprep.subr.mxu0 0.0
    %835 = vmatpush2.msra.mxu0 0.0
    %836 = vmatprep.subr.mxu0 0.0
    %837 = vmatpush2.msra.mxu0 0.0
    %838 = vmatprep.mubr.f32.mxu0 0.0
    %839 = vmatmul.mubr.f32.gmra.mxu0 %v772
    %v840 = vpop.f32.mrf.mxu0
    %v841 = vadd.f32 0.0, %v840
    %v842 = vpop.f32.mrf.mxu0
    %843 = vdwg.mxu0
    %v844 = vadd.f32 %v183, %v841
    %v845 = vtanh.pop %v844
    %v846 = vmul.f32 %v845, 0.5
    %v847 = vadd.f32 %v846, 0.5
    %v848 = vmul.f32 %v847, %v762
    %850 = vrot.lane.b32.xlu0 %v845, 32
    %v851 = vpop.permute.xlu0 %850
    %v853 = vmul.f32 %v847, %v851
    %855 = vrot.lane.b32.xlu0 %v853, 32
    %v856 = vpop.permute.xlu0 %855
    %v858 = vadd.f32 %v848, %v856
    %v859 = vtanh.pop %v858
    %861 = vrot.lane.b32.xlu0 %v859, 32
    %v862 = vpop.permute.xlu0 %861
    %v864 = vmul.f32 %v847, %v862
    %866 = vrot.lane.b32.xlu0 %v864, 64
    %v867 = vpop.permute.xlu0 %866
    %v868 = vsel %vm61, %v867, 0
    %870 = vmatprep.subr.mxu0 0.0
    %871 = vmatpush1.msra.mxu0 0.0
    %872 = vmatprep.subr.mxu0 0.0
    %873 = vmatpush1.msra.mxu0 0.0
    %874 = vmatprep.subr.mxu0 0.0
    %875 = vmatpush1.msra.mxu0 0.0
    %876 = vmatprep.subr.mxu0 0.0
    %877 = vmatpush1.msra.mxu0 0.0
    %878 = vmatprep.subr.mxu0 0.0
    %879 = vmatpush1.msra.mxu0 0.0
    %880 = vmatprep.subr.mxu0 0.0
    %881 = vmatpush1.msra.mxu0 0.0
    %882 = vmatprep.subr.mxu0 0.0
    %883 = vmatpush1.msra.mxu0 0.0
    %884 = vmatprep.subr.mxu0 0.0
    %885 = vmatpush1.msra.mxu0 0.0
    %886 = vmatprep.subr.mxu0 0.0
    %887 = vmatpush1.msra.mxu0 0.0
    %888 = vmatprep.subr.mxu0 0.0
    %889 = vmatpush1.msra.mxu0 0.0
    %890 = vmatprep.subr.mxu0 0.0
    %891 = vmatpush1.msra.mxu0 0.0
    %892 = vmatprep.subr.mxu0 0.0
    %893 = vmatpush1.msra.mxu0 0.0
    %894 = vmatprep.subr.mxu0 0.0
    %895 = vmatpush1.msra.mxu0 %v194
    %896 = vmatprep.subr.mxu0 0.0
    %897 = vmatpush1.msra.mxu0 %v193
    %898 = vmatprep.subr.mxu0 0.0
    %899 = vmatpush1.msra.mxu0 %v192
    %900 = vmatprep.subr.mxu0 0.0
    %901 = vmatpush1.msra.mxu0 %v191
    %902 = vmatprep.subr.mxu0 0.0
    %903 = vmatpush2.msra.mxu0 0.0
    %904 = vmatprep.subr.mxu0 0.0
    %905 = vmatpush2.msra.mxu0 0.0
    %906 = vmatprep.subr.mxu0 0.0
    %907 = vmatpush2.msra.mxu0 0.0
    %908 = vmatprep.subr.mxu0 0.0
    %909 = vmatpush2.msra.mxu0 0.0
    %910 = vmatprep.subr.mxu0 0.0
    %911 = vmatpush2.msra.mxu0 0.0
    %912 = vmatprep.subr.mxu0 0.0
    %913 = vmatpush2.msra.mxu0 0.0
    %914 = vmatprep.subr.mxu0 0.0
    %915 = vmatpush2.msra.mxu0 0.0
    %916 = vmatprep.subr.mxu0 0.0
    %917 = vmatpush2.msra.mxu0 0.0
    %918 = vmatprep.subr.mxu0 0.0
    %919 = vmatpush2.msra.mxu0 0.0
    %920 = vmatprep.subr.mxu0 0.0
    %921 = vmatpush2.msra.mxu0 0.0
    %922 = vmatprep.subr.mxu0 0.0
    %923 = vmatpush2.msra.mxu0 0.0
    %924 = vmatprep.subr.mxu0 0.0
    %925 = vmatpush2.msra.mxu0 0.0
    %926 = vmatprep.subr.mxu0 0.0
    %927 = vmatpush2.msra.mxu0 0.0
    %928 = vmatprep.subr.mxu0 0.0
    %929 = vmatpush2.msra.mxu0 0.0
    %930 = vmatprep.subr.mxu0 0.0
    %931 = vmatpush2.msra.mxu0 0.0
    %932 = vmatprep.subr.mxu0 0.0
    %933 = vmatpush2.msra.mxu0 0.0
    %934 = vmatprep.mubr.f32.mxu0 0.0
    %935 = vmatmul.mubr.f32.gmra.mxu0 %v868
    %v936 = vpop.f32.mrf.mxu0
    %v937 = vadd.f32 0.0, %v936
    %v938 = vpop.f32.mrf.mxu0
    %939 = vdwg.mxu0
    %v940 = vadd.f32 %v188, %v937
    %v941 = vtanh.pop %v940
    %v942 = vmul.f32 %v941, 0.5
    %v943 = vadd.f32 %v942, 0.5
    %v944 = vmul.f32 %v943, %v858
    %946 = vrot.lane.b32.xlu0 %v941, 32
    %v947 = vpop.permute.xlu0 %946
    %v949 = vmul.f32 %v943, %v947
    %951 = vrot.lane.b32.xlu0 %v949, 32
    %v952 = vpop.permute.xlu0 %951
    %v954 = vadd.f32 %v944, %v952
    %v955 = vtanh.pop %v954
    %957 = vrot.lane.b32.xlu0 %v955, 32
    %v958 = vpop.permute.xlu0 %957
    %v960 = vmul.f32 %v943, %v958
    %962 = vrot.lane.b32.xlu0 %v960, 64
    %v963 = vpop.permute.xlu0 %962
    %vm972 = vcmask 130048
    %v973 = vsel %vm972, %v291, %v963
    %v974 = vsel %vm972, %v387, %v867
    %v975 = vsel %vm972, %v483, %v771
    %v976 = vsel %vm972, %v579, %v675
    %v977 = vsel %vm972, %v675, %v579
    %v978 = vsel %vm972, %v771, %v483
    %v979 = vsel %vm972, %v867, %v387
    %v980 = vsel %vm972, %v963, %v291
    %v981 = vtanh.pop %v973
    %v982 = vtanh.pop %v974
    %v983 = vtanh.pop %v975
    %v984 = vtanh.pop %v976
    %v985 = vtanh.pop %v977
    %v986 = vtanh.pop %v978
    %v987 = vtanh.pop %v979
    %v988 = vtanh.pop %v980
    %v989 = vld [vmem:[#allocation2] sm:$0x1]
    %v991 = vlaneseq
    %v992 = vshrl.u32 %v991, 7
    %v993 = vsub.s32 0, %v992
    %v994 = vrot.slane %v989, %v993
    %v996 = vmul.f32 %v981, %v994
    %v997 = vmul.f32 %v982, %v994
    %v998 = vmul.f32 %v983, %v994
    %v999 = vmul.f32 %v984, %v994
    %v1000 = vmul.f32 %v985, %v994
    %v1001 = vmul.f32 %v986, %v994
    %v1002 = vmul.f32 %v987, %v994
    %v1003 = vmul.f32 %v988, %v994
    %v1004 = vsel %vm61, %v996, 0.0
    %1005 = vadd.xlane.f32.xlu0 %v1004
    %v1006 = vpop.xlane.xlu0 %1005
    %v1007 = vsel %vm61, %v997, 0.0
    %1008 = vadd.xlane.f32.xlu0 %v1007
    %v1009 = vpop.xlane.xlu0 %1008
    %v1010 = vsel %vm61, %v998, 0.0
    %1011 = vadd.xlane.f32.xlu0 %v1010
    %v1012 = vpop.xlane.xlu0 %1011
    %v1013 = vsel %vm61, %v999, 0.0
    %1014 = vadd.xlane.f32.xlu0 %v1013
    %v1015 = vpop.xlane.xlu0 %1014
    %v1016 = vsel %vm61, %v1000, 0.0
    %1017 = vadd.xlane.f32.xlu0 %v1016
    %v1018 = vpop.xlane.xlu0 %1017
    %v1019 = vsel %vm61, %v1001, 0.0
    %1020 = vadd.xlane.f32.xlu0 %v1019
    %v1021 = vpop.xlane.xlu0 %1020
    %v1022 = vsel %vm61, %v1002, 0.0
    %1023 = vadd.xlane.f32.xlu0 %v1022
    %v1024 = vpop.xlane.xlu0 %1023
    %v1025 = vsel %vm61, %v1003, 0.0
    %1026 = vadd.xlane.f32.xlu0 %v1025
    %v1027 = vpop.xlane.xlu0 %1026
    %v1036 = vlaneseq
    %v1037 = vand.u32 %v1036, 127
    %v1038 = vlaneseq
    %v1039 = vshrl.u32 %v1038, 7
    %v1040 = vsub.s32 %v1037, %v1039
    %v1041 = vrot.slane %v1006, %v1040
    %v1042 = vlaneseq
    %v1043 = vshrl.u32 %v1042, 7
    %v1044 = vsub.s32 %v1037, %v1043
    %v1045 = vrot.slane %v1009, %v1044
    %v1046 = vlaneseq
    %v1047 = vshrl.u32 %v1046, 7
    %v1048 = vsub.s32 %v1037, %v1047
    %v1049 = vrot.slane %v1012, %v1048
    %v1050 = vlaneseq
    %v1051 = vshrl.u32 %v1050, 7
    %v1052 = vsub.s32 %v1037, %v1051
    %v1053 = vrot.slane %v1015, %v1052
    %v1054 = vlaneseq
    %v1055 = vshrl.u32 %v1054, 7
    %v1056 = vsub.s32 %v1037, %v1055
    %v1057 = vrot.slane %v1018, %v1056
    %v1058 = vlaneseq
    %v1059 = vshrl.u32 %v1058, 7
    %v1060 = vsub.s32 %v1037, %v1059
    %v1061 = vrot.slane %v1021, %v1060
    %v1062 = vlaneseq
    %v1063 = vshrl.u32 %v1062, 7
    %v1064 = vsub.s32 %v1037, %v1063
    %v1065 = vrot.slane %v1024, %v1064
    %v1066 = vlaneseq
    %v1067 = vshrl.u32 %v1066, 7
    %v1068 = vsub.s32 %v1037, %v1067
    %v1069 = vrot.slane %v1027, %v1068
    %vm1070 = vcmask 1041409
    %v1071 = vsel %vm1070, %v1045, %v1041
    %vm1072 = vcmask 1042434
    %v1073 = vsel %vm1072, %v1049, %v1071
    %vm1074 = vcmask 1043459
    %v1075 = vsel %vm1074, %v1053, %v1073
    %vm1076 = vcmask 1044484
    %v1077 = vsel %vm1076, %v1057, %v1075
    %vm1078 = vcmask 1045509
    %v1079 = vsel %vm1078, %v1061, %v1077
    %vm1080 = vcmask 1046534
    %v1081 = vsel %vm1080, %v1065, %v1079
    %vm1082 = vcmask 1047559
    %v1083 = vsel %vm1082, %v1069, %v1081
    %vm1085 = vcmask 64512
    %v1086 = vsel %vm1085, %v1083, -inf
    %1087 = vmax.xlane.f32.xlu0 %v1086
    %v1088 = vpop.xlane.xlu0 %1087
    %v1090 = vlaneseq
    %v1091 = vshrl.u32 %v1090, 7
    %v1092 = vsub.s32 0, %v1091
    %v1093 = vrot.slane %v1088, %v1092
    %v1094 = vlaneseq
    %v1095 = vshrl.u32 %v1094, 7
    %v1096 = vsub.s32 1, %v1095
    %v1097 = vrot.slane %v1088, %v1096
    %v1098 = vlaneseq
    %v1099 = vshrl.u32 %v1098, 7
    %v1100 = vsub.s32 2, %v1099
    %v1101 = vrot.slane %v1088, %v1100
    %v1102 = vlaneseq
    %v1103 = vshrl.u32 %v1102, 7
    %v1104 = vsub.s32 3, %v1103
    %v1105 = vrot.slane %v1088, %v1104
    %v1106 = vlaneseq
    %v1107 = vshrl.u32 %v1106, 7
    %v1108 = vsub.s32 4, %v1107
    %v1109 = vrot.slane %v1088, %v1108
    %v1110 = vlaneseq
    %v1111 = vshrl.u32 %v1110, 7
    %v1112 = vsub.s32 5, %v1111
    %v1113 = vrot.slane %v1088, %v1112
    %v1114 = vlaneseq
    %v1115 = vshrl.u32 %v1114, 7
    %v1116 = vsub.s32 6, %v1115
    %v1117 = vrot.slane %v1088, %v1116
    %v1118 = vlaneseq
    %v1119 = vshrl.u32 %v1118, 7
    %v1120 = vsub.s32 7, %v1119
    %v1121 = vrot.slane %v1088, %v1120
    %v1130 = vsub.f32 %v1006, %v1093
    %v1131 = vsub.f32 %v1009, %v1097
    %v1132 = vsub.f32 %v1012, %v1101
    %v1133 = vsub.f32 %v1015, %v1105
    %v1134 = vsub.f32 %v1018, %v1109
    %v1135 = vsub.f32 %v1021, %v1113
    %v1136 = vsub.f32 %v1024, %v1117
    %v1137 = vsub.f32 %v1027, %v1121
    %v1138 = vmul.f32 %v1130, 1.442695
    %v1139 = vpow.pop %v1138
    %v1140 = vmul.f32 %v1131, 1.442695
    %v1141 = vpow.pop %v1140
    %v1142 = vmul.f32 %v1132, 1.442695
    %v1143 = vpow.pop %v1142
    %v1144 = vmul.f32 %v1133, 1.442695
    %v1145 = vpow.pop %v1144
    %v1146 = vmul.f32 %v1134, 1.442695
    %v1147 = vpow.pop %v1146
    %v1148 = vmul.f32 %v1135, 1.442695
    %v1149 = vpow.pop %v1148
    %v1150 = vmul.f32 %v1136, 1.442695
    %v1151 = vpow.pop %v1150
    %v1152 = vmul.f32 %v1137, 1.442695
    %v1153 = vpow.pop %v1152
    %1162 = vset.pattern.permute.xlu0 0
    %1163 = vperm.xlu0 %1162, %v1139
    %v1164 = vpop.permute.xlu0 %1163
    %1165 = vset.pattern.permute.xlu0 0
    %1166 = vperm.xlu0 %1165, %v1141
    %v1167 = vpop.permute.xlu0 %1166
    %1168 = vset.pattern.permute.xlu0 0
    %1169 = vperm.xlu0 %1168, %v1143
    %v1170 = vpop.permute.xlu0 %1169
    %1171 = vset.pattern.permute.xlu0 0
    %1172 = vperm.xlu0 %1171, %v1145
    %v1173 = vpop.permute.xlu0 %1172
    %1174 = vset.pattern.permute.xlu0 0
    %1175 = vperm.xlu0 %1174, %v1147
    %v1176 = vpop.permute.xlu0 %1175
    %1177 = vset.pattern.permute.xlu0 0
    %1178 = vperm.xlu0 %1177, %v1149
    %v1179 = vpop.permute.xlu0 %1178
    %1180 = vset.pattern.permute.xlu0 0
    %1181 = vperm.xlu0 %1180, %v1151
    %v1182 = vpop.permute.xlu0 %1181
    %1183 = vset.pattern.permute.xlu0 0
    %1184 = vperm.xlu0 %1183, %v1153
    %v1185 = vpop.permute.xlu0 %1184
    %v1186 = vlaneseq
    %v1187 = vshrl.u32 %v1186, 7
    %v1188 = vsub.s32 %v1037, %v1187
    %v1189 = vrot.slane %v1164, %v1188
    %v1190 = vlaneseq
    %v1191 = vshrl.u32 %v1190, 7
    %v1192 = vsub.s32 %v1037, %v1191
    %v1193 = vrot.slane %v1167, %v1192
    %v1194 = vlaneseq
    %v1195 = vshrl.u32 %v1194, 7
    %v1196 = vsub.s32 %v1037, %v1195
    %v1197 = vrot.slane %v1170, %v1196
    %v1198 = vlaneseq
    %v1199 = vshrl.u32 %v1198, 7
    %v1200 = vsub.s32 %v1037, %v1199
    %v1201 = vrot.slane %v1173, %v1200
    %v1202 = vlaneseq
    %v1203 = vshrl.u32 %v1202, 7
    %v1204 = vsub.s32 %v1037, %v1203
    %v1205 = vrot.slane %v1176, %v1204
    %v1206 = vlaneseq
    %v1207 = vshrl.u32 %v1206, 7
    %v1208 = vsub.s32 %v1037, %v1207
    %v1209 = vrot.slane %v1179, %v1208
    %v1210 = vlaneseq
    %v1211 = vshrl.u32 %v1210, 7
    %v1212 = vsub.s32 %v1037, %v1211
    %v1213 = vrot.slane %v1182, %v1212
    %v1214 = vlaneseq
    %v1215 = vshrl.u32 %v1214, 7
    %v1216 = vsub.s32 %v1037, %v1215
    %v1217 = vrot.slane %v1185, %v1216
    %v1218 = vsel %vm1070, %v1193, %v1189
    %v1219 = vsel %vm1072, %v1197, %v1218
    %v1220 = vsel %vm1074, %v1201, %v1219
    %v1221 = vsel %vm1076, %v1205, %v1220
    %v1222 = vsel %vm1078, %v1209, %v1221
    %v1223 = vsel %vm1080, %v1213, %v1222
    %v1224 = vsel %vm1082, %v1217, %v1223
    %v1226 = vsel %vm1085, %v1224, 0.0
    %1227 = vadd.xlane.f32.xlu0 %v1226
    %v1228 = vpop.xlane.xlu0 %1227
    %v1229 = vrcp.pop %v1228
    %v1231 = vlaneseq
    %v1232 = vshrl.u32 %v1231, 7
    %v1233 = vsub.s32 0, %v1232
    %v1234 = vrot.slane %v1229, %v1233
    %v1235 = vlaneseq
    %v1236 = vshrl.u32 %v1235, 7
    %v1237 = vsub.s32 1, %v1236
    %v1238 = vrot.slane %v1229, %v1237
    %v1239 = vlaneseq
    %v1240 = vshrl.u32 %v1239, 7
    %v1241 = vsub.s32 2, %v1240
    %v1242 = vrot.slane %v1229, %v1241
    %v1243 = vlaneseq
    %v1244 = vshrl.u32 %v1243, 7
    %v1245 = vsub.s32 3, %v1244
    %v1246 = vrot.slane %v1229, %v1245
    %v1247 = vlaneseq
    %v1248 = vshrl.u32 %v1247, 7
    %v1249 = vsub.s32 4, %v1248
    %v1250 = vrot.slane %v1229, %v1249
    %v1251 = vlaneseq
    %v1252 = vshrl.u32 %v1251, 7
    %v1253 = vsub.s32 5, %v1252
    %v1254 = vrot.slane %v1229, %v1253
    %v1255 = vlaneseq
    %v1256 = vshrl.u32 %v1255, 7
    %v1257 = vsub.s32 6, %v1256
    %v1258 = vrot.slane %v1229, %v1257
    %v1259 = vlaneseq
    %v1260 = vshrl.u32 %v1259, 7
    %v1261 = vsub.s32 7, %v1260
    %v1262 = vrot.slane %v1229, %v1261
    %v1271 = vmul.f32 %v1139, %v1234
    %v1272 = vmul.f32 %v1141, %v1238
    %v1273 = vmul.f32 %v1143, %v1242
    %v1274 = vmul.f32 %v1145, %v1246
    %v1275 = vmul.f32 %v1147, %v1250
    %v1276 = vmul.f32 %v1149, %v1254
    %v1277 = vmul.f32 %v1151, %v1258
    %v1278 = vmul.f32 %v1153, %v1262
    %1280 = vset.pattern.permute.xlu0 0
    %1281 = vperm.xlu0 %1280, %v1271
    %v1282 = vpop.permute.xlu0 %1281
    %1285 = vset.pattern.permute.xlu0 0
    %1286 = vperm.xlu0 %1285, %v1272
    %v1287 = vpop.permute.xlu0 %1286
    %1290 = vset.pattern.permute.xlu0 0
    %1291 = vperm.xlu0 %1290, %v1273
    %v1292 = vpop.permute.xlu0 %1291
    %1295 = vset.pattern.permute.xlu0 0
    %1296 = vperm.xlu0 %1295, %v1274
    %v1297 = vpop.permute.xlu0 %1296
    %1300 = vset.pattern.permute.xlu0 0
    %1301 = vperm.xlu0 %1300, %v1275
    %v1302 = vpop.permute.xlu0 %1301
    %1305 = vset.pattern.permute.xlu0 0
    %1306 = vperm.xlu0 %1305, %v1276
    %v1307 = vpop.permute.xlu0 %1306
    %1310 = vset.pattern.permute.xlu0 0
    %1311 = vperm.xlu0 %1310, %v1277
    %v1312 = vpop.permute.xlu0 %1311
    %1315 = vset.pattern.permute.xlu0 0
    %1316 = vperm.xlu0 %1315, %v1278
    %v1317 = vpop.permute.xlu0 %1316
    %v1319 = vmul.f32 %v973, %v1282
    %v1320 = vmul.f32 %v974, %v1287
    %v1321 = vmul.f32 %v975, %v1292
    %v1322 = vmul.f32 %v976, %v1297
    %v1323 = vmul.f32 %v977, %v1302
    %v1324 = vmul.f32 %v978, %v1307
    %v1325 = vmul.f32 %v979, %v1312
    %v1326 = vmul.f32 %v980, %v1317
    %v1327 = vsel %vm61, %v1319, 0.0
    %v1328 = vrot.slane %v1327, 4
    %v1329 = vadd.f32 %v1327, %v1328
    %v1330 = vrot.slane %v1329, 2
    %v1331 = vadd.f32 %v1329, %v1330
    %v1332 = vrot.slane %v1331, 1
    %v1333 = vadd.f32 %v1331, %v1332
    %v1334 = vsel %vm61, %v1320, 0.0
    %v1335 = vrot.slane %v1334, 4
    %v1336 = vadd.f32 %v1334, %v1335
    %v1337 = vrot.slane %v1336, 2
    %v1338 = vadd.f32 %v1336, %v1337
    %v1339 = vrot.slane %v1338, 1
    %v1340 = vadd.f32 %v1338, %v1339
    %v1341 = vsel %vm61, %v1321, 0.0
    %v1342 = vrot.slane %v1341, 4
    %v1343 = vadd.f32 %v1341, %v1342
    %v1344 = vrot.slane %v1343, 2
    %v1345 = vadd.f32 %v1343, %v1344
    %v1346 = vrot.slane %v1345, 1
    %v1347 = vadd.f32 %v1345, %v1346
    %v1348 = vsel %vm61, %v1322, 0.0
    %v1349 = vrot.slane %v1348, 4
    %v1350 = vadd.f32 %v1348, %v1349
    %v1351 = vrot.slane %v1350, 2
    %v1352 = vadd.f32 %v1350, %v1351
    %v1353 = vrot.slane %v1352, 1
    %v1354 = vadd.f32 %v1352, %v1353
    %v1355 = vsel %vm61, %v1323, 0.0
    %v1356 = vrot.slane %v1355, 4
    %v1357 = vadd.f32 %v1355, %v1356
    %v1358 = vrot.slane %v1357, 2
    %v1359 = vadd.f32 %v1357, %v1358
    %v1360 = vrot.slane %v1359, 1
    %v1361 = vadd.f32 %v1359, %v1360
    %v1362 = vsel %vm61, %v1324, 0.0
    %v1363 = vrot.slane %v1362, 4
    %v1364 = vadd.f32 %v1362, %v1363
    %v1365 = vrot.slane %v1364, 2
    %v1366 = vadd.f32 %v1364, %v1365
    %v1367 = vrot.slane %v1366, 1
    %v1368 = vadd.f32 %v1366, %v1367
    %v1369 = vsel %vm61, %v1325, 0.0
    %v1370 = vrot.slane %v1369, 4
    %v1371 = vadd.f32 %v1369, %v1370
    %v1372 = vrot.slane %v1371, 2
    %v1373 = vadd.f32 %v1371, %v1372
    %v1374 = vrot.slane %v1373, 1
    %v1375 = vadd.f32 %v1373, %v1374
    %v1376 = vsel %vm61, %v1326, 0.0
    %v1377 = vrot.slane %v1376, 4
    %v1378 = vadd.f32 %v1376, %v1377
    %v1379 = vrot.slane %v1378, 2
    %v1380 = vadd.f32 %v1378, %v1379
    %v1381 = vrot.slane %v1380, 1
    %v1382 = vadd.f32 %v1380, %v1381
    %v1383 = vld [vmem:[%s5] sm:$0xff]
    %v1384 = vld [vmem:[%s5 + $0x8] sm:$0xff]
    %v1385 = vld [vmem:[%s5 + $0x10] sm:$0xff]
    %v1386 = vld [vmem:[%s5 + $0x18] sm:$0xff]
    %v1387 = vld [vmem:[%s6] sm:$0x1]
    %v1389 = vlaneseq
    %v1390 = vshrl.u32 %v1389, 7
    %v1391 = vsub.s32 0, %v1390
    %v1392 = vrot.slane %v1387, %v1391
    %v1402 = vsel %vm1070, %v1340, %v1333
    %v1403 = vsel %vm1072, %v1347, %v1402
    %v1404 = vsel %vm1074, %v1354, %v1403
    %v1405 = vsel %vm1076, %v1361, %v1404
    %v1406 = vsel %vm1078, %v1368, %v1405
    %v1407 = vsel %vm1080, %v1375, %v1406
    %v1408 = vsel %vm1082, %v1382, %v1407
    %v1409 = vsel %vm61, %v1408, 0
    %1411 = vmatprep.subr.mxu0 0.0
    %1412 = vmatpush1.msra.mxu0 0.0
    %1413 = vmatprep.subr.mxu0 0.0
    %1414 = vmatpush1.msra.mxu0 0.0
    %1415 = vmatprep.subr.mxu0 0.0
    %1416 = vmatpush1.msra.mxu0 0.0
    %1417 = vmatprep.subr.mxu0 0.0
    %1418 = vmatpush1.msra.mxu0 0.0
    %1419 = vmatprep.subr.mxu0 0.0
    %1420 = vmatpush1.msra.mxu0 0.0
    %1421 = vmatprep.subr.mxu0 0.0
    %1422 = vmatpush1.msra.mxu0 0.0
    %1423 = vmatprep.subr.mxu0 0.0
    %1424 = vmatpush1.msra.mxu0 0.0
    %1425 = vmatprep.subr.mxu0 0.0
    %1426 = vmatpush1.msra.mxu0 0.0
    %1427 = vmatprep.subr.mxu0 0.0
    %1428 = vmatpush1.msra.mxu0 0.0
    %1429 = vmatprep.subr.mxu0 0.0
    %1430 = vmatpush1.msra.mxu0 0.0
    %1431 = vmatprep.subr.mxu0 0.0
    %1432 = vmatpush1.msra.mxu0 0.0
    %1433 = vmatprep.subr.mxu0 0.0
    %1434 = vmatpush1.msra.mxu0 0.0
    %1435 = vmatprep.subr.mxu0 0.0
    %1436 = vmatpush1.msra.mxu0 %v1386
    %1437 = vmatprep.subr.mxu0 0.0
    %1438 = vmatpush1.msra.mxu0 %v1385
    %1439 = vmatprep.subr.mxu0 0.0
    %1440 = vmatpush1.msra.mxu0 %v1384
    %1441 = vmatprep.subr.mxu0 0.0
    %1442 = vmatpush1.msra.mxu0 %v1383
    %1443 = vmatprep.subr.mxu0 0.0
    %1444 = vmatpush2.msra.mxu0 0.0
    %1445 = vmatprep.subr.mxu0 0.0
    %1446 = vmatpush2.msra.mxu0 0.0
    %1447 = vmatprep.subr.mxu0 0.0
    %1448 = vmatpush2.msra.mxu0 0.0
    %1449 = vmatprep.subr.mxu0 0.0
    %1450 = vmatpush2.msra.mxu0 0.0
    %1451 = vmatprep.subr.mxu0 0.0
    %1452 = vmatpush2.msra.mxu0 0.0
    %1453 = vmatprep.subr.mxu0 0.0
    %1454 = vmatpush2.msra.mxu0 0.0
    %1455 = vmatprep.subr.mxu0 0.0
    %1456 = vmatpush2.msra.mxu0 0.0
    %1457 = vmatprep.subr.mxu0 0.0
    %1458 = vmatpush2.msra.mxu0 0.0
    %1459 = vmatprep.subr.mxu0 0.0
    %1460 = vmatpush2.msra.mxu0 0.0
    %1461 = vmatprep.subr.mxu0 0.0
    %1462 = vmatpush2.msra.mxu0 0.0
    %1463 = vmatprep.subr.mxu0 0.0
    %1464 = vmatpush2.msra.mxu0 0.0
    %1465 = vmatprep.subr.mxu0 0.0
    %1466 = vmatpush2.msra.mxu0 0.0
    %1467 = vmatprep.subr.mxu0 0.0
    %1468 = vmatpush2.msra.mxu0 0.0
    %1469 = vmatprep.subr.mxu0 0.0
    %1470 = vmatpush2.msra.mxu0 0.0
    %1471 = vmatprep.subr.mxu0 0.0
    %1472 = vmatpush2.msra.mxu0 0.0
    %1473 = vmatprep.subr.mxu0 0.0
    %1474 = vmatpush2.msra.mxu0 0.0
    %1475 = vmatprep.mubr.f32.mxu0 0.0
    %1476 = vmatmul.mubr.f32.gmra.mxu0 %v1409
    %v1477 = vpop.f32.mrf.mxu0
    %v1478 = vadd.f32 %v1392, %v1477
    %v1479 = vpop.f32.mrf.mxu0
    %1480 = vdwg.mxu0
    %v1481 = vld [vmem:[%s7] sm:$0xff]
    %v1482 = vadd.f32 %v1478, %v1481
    %1483 = vst [vmem:[#allocation5] sm:$0xff] %v1482
    // Predicated region
    $region38: #{tpu_custom_call.1} parent=1 // pred_check
      _
    $region39: #{tpu_custom_call.1} parent=1 // pred_check_branch
      %1485 = sbr.rel (0) target = $region41
    $region40: #{tpu_custom_call.1} parent=1 // pred_region
      %s1487 = ssub.s32 128, 128
      %1488 = vsyncadd [#allocation4], %s1487
      %s1490 = sshll.u32 [#allocation5], 4
      %s1491 = int_to_ptr.vmem [resolvable:$true] %s1490
      %1493 = dma.vmem_to_hbm [thread:$0]  %s1491, 128, %s8, [#allocation4]
    $region41: #{tpu_custom_call.1} parent=1 // pred_fallthru
      _
    // Predicated region
    $region42: #{tpu_custom_call.1} parent=1 // pred_check
      _
    $region43: #{tpu_custom_call.1} parent=1 // pred_check_branch
      %1495 = sbr.rel (0) target = $region45
    $region44: #{tpu_custom_call.1} parent=1 // pred_region
      %1496 = dma.done [#allocation4], 128
    $region45: #{tpu_custom_call.1} parent=1 // pred_fallthru
      _
    %1497 = vsyncpa [#allocation3], 1
    %1498 = vsyncpa [#allocation4], 1

</llo_original>
